<compile_context>
chip_gen: v6e
topology: v6e:2x2x1
jax: 0.10.0
libtpu: 0.0.40
codegen_flags: <defaults>
</compile_context>

<pallas_src>
import functools
import math

import jax
import jax.numpy as jnp
from jax import lax
from jax.experimental import pallas as pl
from jax.experimental.pallas import tpu as pltpu

# ---- small demo hyperparameters consistent with BERTEmbedder(n_embed, n_layer) ----
N_EMBED = 32          # n_embed
N_LAYER = 2           # n_layer
VOCAB_SIZE = 100      # (real module: 30522)
MAX_SEQ_LEN = 8       # (real module: 77)
HEADS = 4             # (x-transformers default is 8 heads x 64 dim_head; scaled down here)
DIM_HEAD = N_EMBED // HEADS
INNER_DIM = HEADS * DIM_HEAD
FF_MULT = 4
FF_INNER = N_EMBED * FF_MULT
SCALE = DIM_HEAD ** -0.5
LN_EPS = 1e-5


def _layer_norm(x, g, b):
    # f32 statistics (correctness requirement when matmuls run in bf16)
    mu = jnp.mean(x, axis=-1, keepdims=True)
    var = jnp.mean(jnp.square(x - mu), axis=-1, keepdims=True)
    return (x - mu) * lax.rsqrt(var + LN_EPS) * g + b


def _gelu(x):
    # exact (erf) GELU, matching torch.nn.GELU()
    return 0.5 * x * (1.0 + lax.erf(x * (1.0 / math.sqrt(2.0))))


def fused_transformer_kernel(
    x0_hbm,            # (B*S, D) f32, raw HBM ref (memory_space=pl.ANY), aliased with output
    vecs_ref,          # (1, 6, D) f32: ln1_g, ln1_b, bo, ln2_g, ln2_b, b2
    wq_ref, wk_ref, wv_ref,   # (1, D, INNER) bf16 (SCALE folded into wq)
    wo_ref,            # (1, INNER, D) bf16
    w1_ref, b1_ref, w2_ref,   # (1, D, F) bf16, (1, 1, F) f32, (1, F, D) bf16
    fin_ref,           # (2, D) f32 final-LN gamma/beta
    out_ref,           # (rows, D) f32 resident activation block (carried across layers)
    *, b_local, seq,
):
    """Grid = (batch_split, layer).  One grid step == one transformer layer on one batch
    split; the (rows, D) activation stays resident in the revisited output block."""
    split = pl.program_id(0)
    layer = pl.program_id(1)
    last = pl.num_programs(1) - 1
    rows = b_local * seq

    # ---- layer 0: pull x0 (tok_emb + pos_emb, computed in XLA glue) into the resident block ----
    @pl.when(layer == 0)
    def _init():
        start = pl.multiple_of(split * rows, rows)
        pltpu.sync_copy(x0_hbm.at[pl.ds(start, rows)], out_ref)

    x = out_ref[...]                        # (rows, D) f32, resident across the layer axis

    vec = vecs_ref[0]                       # (6, D)
    ln1_g, ln1_b = vec[0:1], vec[1:2]
    bo = vec[2:3]
    ln2_g, ln2_b = vec[3:4], vec[4:5]
    b2 = vec[5:6]

    # ---- pre-norm multi-head self-attention ----
    # Full-width MXU projections: (rows, D) x (D, INNER); no head/batch replication.
    h = _layer_norm(x, ln1_g, ln1_b).astype(jnp.bfloat16)
    q = jnp.dot(h, wq_ref[0], preferred_element_type=jnp.float32).astype(jnp.bfloat16)
    k = jnp.dot(h, wk_ref[0], preferred_element_type=jnp.float32).astype(jnp.bfloat16)
    v = jnp.dot(h, wv_ref[0], preferred_element_type=jnp.float32).astype(jnp.bfloat16)

    # Per-head softmax / P@V (small SxS matmuls; static unrolled loop over heads).
    # The lane-slice + concat is the head-split relayout; it avoids a 4-D mid-axis transpose.
    heads_out = []
    for hh in range(HEADS):
        sl = slice(hh * DIM_HEAD, (hh + 1) * DIM_HEAD)
        qh = q[:, sl].reshape(b_local, seq, DIM_HEAD)
        kh = k[:, sl].reshape(b_local, seq, DIM_HEAD)
        vh = v[:, sl].reshape(b_local, seq, DIM_HEAD)
        dots = jnp.einsum('bqd,bkd->bqk', qh, kh,
                          preferred_element_type=jnp.float32)     # SCALE pre-folded into wq
        dots = dots - jnp.max(dots, axis=-1, keepdims=True)
        p = jnp.exp(dots)                                          # f32 softmax statistics
        p = p * pl.reciprocal(jnp.sum(p, axis=-1, keepdims=True), approx=True)
        oh = jnp.einsum('bqk,bkd->bqd', p.astype(jnp.bfloat16), vh,
                        preferred_element_type=jnp.float32)        # (b, S, Dh)
        heads_out.append(oh.reshape(rows, DIM_HEAD))

    # Fused out-projection + head sum: ONE (rows, INNER) x (INNER, D) MXU matmul.
    og = jnp.concatenate(heads_out, axis=-1).astype(jnp.bfloat16)   # (rows, INNER)
    attn = jnp.dot(og, wo_ref[0], preferred_element_type=jnp.float32) + bo
    x = x + attn

    # ---- pre-norm feed-forward: Linear -> GELU(erf) -> Linear ----
    # TODO(synk): at real LDM sizes (D=1280, F=5120, 32 layers) tile w1/w2 along F with an
    # inner column grid axis (or pltpu.emit_pipeline) so double-buffered weights fit v7x's
    # 64 MiB VMEM; the demo whole-layer weights fit every generation as-is.
    h2 = _layer_norm(x, ln2_g, ln2_b).astype(jnp.bfloat16)
    f = jnp.dot(h2, w1_ref[0], preferred_element_type=jnp.float32) + b1_ref[0]
    f = _gelu(f).astype(jnp.bfloat16)                               # GELU kept in f32 math
    f = jnp.dot(f, w2_ref[0], preferred_element_type=jnp.float32) + b2
    x = x + f

    # ---- exactly one store per layer; final LayerNorm fused into the last store ----
    @pl.when(layer != last)
    def _store():
        out_ref[...] = x

    @pl.when(layer == last)
    def _store_final():
        fin = fin_ref[...]
        out_ref[...] = _layer_norm(x, fin[0:1], fin[1:2])


def _layer_spec(arr):
    """Per-layer stacked weight: block (1, ...) streamed by the layer grid axis."""
    tail = arr.ndim - 1
    return pl.BlockSpec((1,) + tuple(arr.shape[1:]),
                        lambda b, l, _t=tail: (l,) + (0,) * _t)


def _const_spec(arr):
    """Whole array resident across all grid steps (same block every step)."""
    nd = arr.ndim
    return pl.BlockSpec(tuple(arr.shape), lambda b, l, _n=nd: (0,) * _n)


def bert_embedder_forward(tokens, params):
    # TODO(synk): the HuggingFace BERT tokenizer (strings -> token ids) has no Pallas
    # equivalent; this forward consumes integer token ids directly (use_tokenizer=False path).
    B, S = tokens.shape
    D = N_EMBED
    M = B * S
    n_split = 2 if B % 2 == 0 else 1        # leading "parallel" axis for v7x's 2 TensorCores
    b_local = B // n_split
    rows = b_local * S

    # token-embedding gather + positional add stay in XLA glue; the result is handed to the
    # kernel as an HBM ref aliased with the output (copied into VMEM once at layer 0).
    x0 = (params['tok_emb'][tokens] + params['pos_emb'][None, :S]).reshape(M, D)
    x0 = x0.astype(jnp.float32)

    weights = (params['vecs'], params['wq'], params['wk'], params['wv'],
               params['wo'], params['w1'], params['b1'], params['w2'])

    in_specs = [pl.BlockSpec(memory_space=pl.ANY)]          # x0 (HBM, no resident VMEM slot)
    in_specs += [_layer_spec(w) for w in weights]
    in_specs += [_const_spec(params['fin'])]

    # NOTE: at demo size D=32 (<128 lanes) the output stores are masked; at real LDM sizes
    # D=1280 the resident block is lane-dense.  Pad S (77 -> 80) before any finer row tiling.
    out = pl.pallas_call(
        functools.partial(fused_transformer_kernel, b_local=b_local, seq=S),
        out_shape=jax.ShapeDtypeStruct((M, D), jnp.float32),
        grid=(n_split, N_LAYER),
        in_specs=in_specs,
        out_specs=pl.BlockSpec((rows, D), lambda b, l: (b, 0)),
        input_output_aliases={0: 0},                        # output reuses x0's HBM buffer
        compiler_params=pltpu.CompilerParams(
            # batch split is independent ("parallel"); the layer axis carries the residual
            # through the resident output block and must stay "arbitrary" (sequential).
            dimension_semantics=("parallel", "arbitrary"),
            vmem_limit_bytes=48 * 1024 * 1024,
        ),
    )(x0, *weights, params['fin'])
    return out.reshape(B, S, D)


def init_params(key):
    ks = jax.random.split(key, 8)
    L, D, H, Dh, F = N_LAYER, N_EMBED, HEADS, DIM_HEAD, FF_INNER
    inner = H * Dh

    def nrm(k, shape):
        return 0.02 * jax.random.normal(k, shape, jnp.float32)

    # torch layouts (D, INNER) / (INNER, D); fold 1/sqrt(dim_head) into W_q (one-time transform).
    wq = nrm(ks[2], (L, D, inner)) * SCALE
    wk = nrm(ks[3], (L, D, inner))
    wv = nrm(ks[4], (L, D, inner))
    wo = nrm(ks[5], (L, inner, D))

    # packed per-layer (6, D) vector bundle: ln1_g, ln1_b, bo, ln2_g, ln2_b, b2
    vecs = jnp.stack([
        jnp.ones((L, D), jnp.float32), jnp.zeros((L, D), jnp.float32),   # ln1 gamma/beta
        jnp.zeros((L, D), jnp.float32),                                  # attn out-proj bias
        jnp.ones((L, D), jnp.float32), jnp.zeros((L, D), jnp.float32),   # ln2 gamma/beta
        jnp.zeros((L, D), jnp.float32),                                  # ff second bias
    ], axis=1)                                                           # (L, 6, D)

    return {
        'tok_emb': nrm(ks[0], (VOCAB_SIZE, D)),
        'pos_emb': nrm(ks[1], (MAX_SEQ_LEN, D)),
        'vecs': vecs,
        'wq': wq.astype(jnp.bfloat16),
        'wk': wk.astype(jnp.bfloat16),
        'wv': wv.astype(jnp.bfloat16),
        'wo': wo.astype(jnp.bfloat16),
        'w1': nrm(ks[6], (L, D, F)).astype(jnp.bfloat16),
        'b1': jnp.zeros((L, 1, F), jnp.float32),
        'w2': nrm(ks[7], (L, F, D)).astype(jnp.bfloat16),
        'fin': jnp.stack([jnp.ones((D,), jnp.float32),
                          jnp.zeros((D,), jnp.float32)], axis=0),        # (2, D) final-LN g/b
    }


if __name__ == "__main__":
    key = jax.random.PRNGKey(0)
    pkey, tkey = jax.random.split(key)
    params = init_params(pkey)
    tokens = jax.random.randint(tkey, (2, MAX_SEQ_LEN), 0, VOCAB_SIZE, dtype=jnp.int32)

    fwd = jax.jit(bert_embedder_forward)
    z = fwd(tokens, params)
    z = jax.block_until_ready(z)

    assert z.shape == (2, MAX_SEQ_LEN, N_EMBED) and z.dtype == jnp.float32
    assert bool(jnp.all(jnp.isfinite(z)))
    print("KERNEL_OK")
</pallas_src>

<mosaic_0001>
module attributes {stable_mosaic.version = 11 : i64} {
  func.func @fused_transformer_kernel(%arg0: i32, %arg1: i32, %arg2: memref<16x32xf32, #tpu.memory_space<any>>, %arg3: memref<1x6x32xf32, #tpu.memory_space<vmem>>, %arg4: memref<1x32x32xbf16, #tpu.memory_space<vmem>>, %arg5: memref<1x32x32xbf16, #tpu.memory_space<vmem>>, %arg6: memref<1x32x32xbf16, #tpu.memory_space<vmem>>, %arg7: memref<1x32x32xbf16, #tpu.memory_space<vmem>>, %arg8: memref<1x32x128xbf16, #tpu.memory_space<vmem>>, %arg9: memref<1x1x128xf32, #tpu.memory_space<vmem>>, %arg10: memref<1x128x32xbf16, #tpu.memory_space<vmem>>, %arg11: memref<2x32xf32, #tpu.memory_space<vmem>>, %arg12: memref<8x32xf32, #tpu.memory_space<vmem>>) attributes {dimension_semantics = [#tpu.dimension_semantics<parallel>, #tpu.dimension_semantics<arbitrary>], iteration_bounds = array<i64: 2, 2>, scalar_prefetch = 0 : i64, scratch_operands = 0 : i64, tpu.core_type = #tpu.core_type<tc>, window_params = [{}, {transform_indices = @transform_1, window_bounds = array<i64: 1, 6, 32>}, {transform_indices = @transform_2, window_bounds = array<i64: 1, 32, 32>}, {transform_indices = @transform_3, window_bounds = array<i64: 1, 32, 32>}, {transform_indices = @transform_4, window_bounds = array<i64: 1, 32, 32>}, {transform_indices = @transform_5, window_bounds = array<i64: 1, 32, 32>}, {transform_indices = @transform_6, window_bounds = array<i64: 1, 32, 128>}, {transform_indices = @transform_7, window_bounds = array<i64: 1, 1, 128>}, {transform_indices = @transform_8, window_bounds = array<i64: 1, 128, 32>}, {pipeline_mode = #tpu.pipeline_mode<synchronous>, transform_indices = @transform_9, window_bounds = array<i64: 2, 32>}, {transform_indices = @transform_10, window_bounds = array<i64: 8, 32>}]} {
    %c0_i32 = arith.constant 0 : i32
    %0 = arith.cmpi eq, %arg1, %c0_i32 : i32
    %1 = arith.extui %0 : i1 to i32
    %c0_i32_0 = arith.constant 0 : i32
    %2 = arith.cmpi ne, %1, %c0_i32_0 : i32
    scf.if %2 {
      %c8_i32 = arith.constant 8 : i32
      %186 = arith.muli %arg0, %c8_i32 : i32
      %187 = tpu.assume_multiple %186, 8 : i32
      "tpu.region"() ({
        %188 = tpu.sem_alloc : memref<!tpu.dma_semaphore, #tpu.memory_space<semaphore_mem>>
        %c0_i32_63 = arith.constant 0 : i32
        %189 = tpu.memref_slice %arg2[%187, %c0_i32_63] : memref<16x32xf32, #tpu.memory_space<any>> -> memref<8x32xf32, #tpu.memory_space<any>>
        tpu.enqueue_dma source(%189 : memref<8x32xf32, #tpu.memory_space<any>>) target(%arg12 : memref<8x32xf32, #tpu.memory_space<vmem>>) target_semaphore(%188 : memref<!tpu.dma_semaphore, #tpu.memory_space<semaphore_mem>>)
        %c0_i32_64 = arith.constant 0 : i32
        %190 = tpu.memref_slice %arg2[%187, %c0_i32_64] : memref<16x32xf32, #tpu.memory_space<any>> -> memref<8x32xf32, #tpu.memory_space<any>>
        tpu.wait_dma2 semaphore(%188 : memref<!tpu.dma_semaphore, #tpu.memory_space<semaphore_mem>>) src(%190 : memref<8x32xf32, #tpu.memory_space<any>>) dst(%arg12 : memref<8x32xf32, #tpu.memory_space<vmem>>)
        tpu.yield
      }) : () -> ()
    } else {
    }
    %c0 = arith.constant 0 : index
    %c0_1 = arith.constant 0 : index
    %3 = vector.load %arg12[%c0, %c0_1] : memref<8x32xf32, #tpu.memory_space<vmem>>, vector<8x32xf32>
    %c0_2 = arith.constant 0 : index
    %c0_3 = arith.constant 0 : index
    %c0_4 = arith.constant 0 : index
    %4 = vector.load %arg3[%c0_2, %c0_3, %c0_4] : memref<1x6x32xf32, #tpu.memory_space<vmem>>, vector<1x6x32xf32>
    %5 = vector.shape_cast %4 : vector<1x6x32xf32> to vector<6x32xf32>
    %6 = vector.extract_strided_slice %5 {offsets = [0, 0], sizes = [1, 32], strides = [1, 1]} : vector<6x32xf32> to vector<1x32xf32>
    %7 = vector.extract_strided_slice %5 {offsets = [1, 0], sizes = [1, 32], strides = [1, 1]} : vector<6x32xf32> to vector<1x32xf32>
    %8 = vector.extract_strided_slice %5 {offsets = [2, 0], sizes = [1, 32], strides = [1, 1]} : vector<6x32xf32> to vector<1x32xf32>
    %9 = vector.extract_strided_slice %5 {offsets = [3, 0], sizes = [1, 32], strides = [1, 1]} : vector<6x32xf32> to vector<1x32xf32>
    %10 = vector.extract_strided_slice %5 {offsets = [4, 0], sizes = [1, 32], strides = [1, 1]} : vector<6x32xf32> to vector<1x32xf32>
    %11 = vector.extract_strided_slice %5 {offsets = [5, 0], sizes = [1, 32], strides = [1, 1]} : vector<6x32xf32> to vector<1x32xf32>
    %cst = arith.constant dense<0.000000e+00> : vector<8xf32>
    %12 = vector.multi_reduction <add>, %3, %cst [1] : vector<8x32xf32> to vector<8xf32>
    %13 = vector.shape_cast %12 : vector<8xf32> to vector<8x1xf32>
    %cst_5 = arith.constant 3.200000e+01 : f32
    %14 = vector.broadcast %cst_5 : f32 to vector<8x1xf32>
    %15 = arith.divf %13, %14 : vector<8x1xf32>
    %16 = vector.broadcast %15 : vector<8x1xf32> to vector<8x32xf32>
    %17 = arith.subf %3, %16 : vector<8x32xf32>
    %18 = arith.mulf %17, %17 : vector<8x32xf32>
    %cst_6 = arith.constant dense<0.000000e+00> : vector<8xf32>
    %19 = vector.multi_reduction <add>, %18, %cst_6 [1] : vector<8x32xf32> to vector<8xf32>
    %20 = vector.shape_cast %19 : vector<8xf32> to vector<8x1xf32>
    %cst_7 = arith.constant 3.200000e+01 : f32
    %21 = vector.broadcast %cst_7 : f32 to vector<8x1xf32>
    %22 = arith.divf %20, %21 : vector<8x1xf32>
    %23 = vector.broadcast %15 : vector<8x1xf32> to vector<8x32xf32>
    %24 = arith.subf %3, %23 : vector<8x32xf32>
    %cst_8 = arith.constant 9.99999974E-6 : f32
    %25 = vector.broadcast %cst_8 : f32 to vector<8x1xf32>
    %26 = arith.addf %22, %25 : vector<8x1xf32>
    %27 = math.rsqrt %26 : vector<8x1xf32>
    %28 = vector.broadcast %27 : vector<8x1xf32> to vector<8x32xf32>
    %29 = arith.mulf %24, %28 : vector<8x32xf32>
    %30 = vector.broadcast %6 : vector<1x32xf32> to vector<8x32xf32>
    %31 = arith.mulf %29, %30 : vector<8x32xf32>
    %32 = vector.broadcast %7 : vector<1x32xf32> to vector<8x32xf32>
    %33 = arith.addf %31, %32 : vector<8x32xf32>
    %34 = arith.truncf %33 : vector<8x32xf32> to vector<8x32xbf16>
    %c0_9 = arith.constant 0 : index
    %c0_10 = arith.constant 0 : index
    %c0_11 = arith.constant 0 : index
    %35 = vector.load %arg4[%c0_9, %c0_10, %c0_11] : memref<1x32x32xbf16, #tpu.memory_space<vmem>>, vector<1x32x32xbf16>
    %36 = vector.shape_cast %35 : vector<1x32x32xbf16> to vector<32x32xbf16>
    %cst_12 = arith.constant dense<0.000000e+00> : vector<8x32xf32>
    %37 = tpu.matmul %34, %36, %cst_12 {dimension_numbers = #tpu.dot_dimension_numbers<[1], [0], [0], [1], [0, 0, 1, 1], [], []>} : vector<8x32xbf16>, vector<32x32xbf16>, vector<8x32xf32> -> vector<8x32xf32>
    %38 = arith.truncf %37 : vector<8x32xf32> to vector<8x32xbf16>
    %c0_13 = arith.constant 0 : index
    %c0_14 = arith.constant 0 : index
    %c0_15 = arith.constant 0 : index
    %39 = vector.load %arg5[%c0_13, %c0_14, %c0_15] : memref<1x32x32xbf16, #tpu.memory_space<vmem>>, vector<1x32x32xbf16>
    %40 = vector.shape_cast %39 : vector<1x32x32xbf16> to vector<32x32xbf16>
    %cst_16 = arith.constant dense<0.000000e+00> : vector<8x32xf32>
    %41 = tpu.matmul %34, %40, %cst_16 {dimension_numbers = #tpu.dot_dimension_numbers<[1], [0], [0], [1], [0, 0, 1, 1], [], []>} : vector<8x32xbf16>, vector<32x32xbf16>, vector<8x32xf32> -> vector<8x32xf32>
    %42 = arith.truncf %41 : vector<8x32xf32> to vector<8x32xbf16>
    %c0_17 = arith.constant 0 : index
    %c0_18 = arith.constant 0 : index
    %c0_19 = arith.constant 0 : index
    %43 = vector.load %arg6[%c0_17, %c0_18, %c0_19] : memref<1x32x32xbf16, #tpu.memory_space<vmem>>, vector<1x32x32xbf16>
    %44 = vector.shape_cast %43 : vector<1x32x32xbf16> to vector<32x32xbf16>
    %cst_20 = arith.constant dense<0.000000e+00> : vector<8x32xf32>
    %45 = tpu.matmul %34, %44, %cst_20 {dimension_numbers = #tpu.dot_dimension_numbers<[1], [0], [0], [1], [0, 0, 1, 1], [], []>} : vector<8x32xbf16>, vector<32x32xbf16>, vector<8x32xf32> -> vector<8x32xf32>
    %46 = arith.truncf %45 : vector<8x32xf32> to vector<8x32xbf16>
    %47 = vector.extract_strided_slice %38 {offsets = [0, 0], sizes = [8, 8], strides = [1, 1]} : vector<8x32xbf16> to vector<8x8xbf16>
    %48 = vector.shape_cast %47 : vector<8x8xbf16> to vector<1x8x8xbf16>
    %49 = vector.extract_strided_slice %42 {offsets = [0, 0], sizes = [8, 8], strides = [1, 1]} : vector<8x32xbf16> to vector<8x8xbf16>
    %50 = vector.shape_cast %49 : vector<8x8xbf16> to vector<1x8x8xbf16>
    %51 = vector.extract_strided_slice %46 {offsets = [0, 0], sizes = [8, 8], strides = [1, 1]} : vector<8x32xbf16> to vector<8x8xbf16>
    %52 = vector.shape_cast %51 : vector<8x8xbf16> to vector<1x8x8xbf16>
    "tpu.trace_start"() <{level = 10 : i32, message = "bqd,bkd->bqk"}> : () -> ()
    %cst_21 = arith.constant dense<0.000000e+00> : vector<1x8x8xf32>
    %53 = tpu.matmul %48, %50, %cst_21 {dimension_numbers = #tpu.dot_dimension_numbers<[2], [2], [1], [1], [0, 0, 0, 1, 1, 1], [0], [0]>} : vector<1x8x8xbf16>, vector<1x8x8xbf16>, vector<1x8x8xf32> -> vector<1x8x8xf32>
    "tpu.trace_stop"() : () -> ()
    %cst_22 = arith.constant dense<0xFF800000> : vector<1x8xf32>
    %54 = vector.multi_reduction <maximumf>, %53, %cst_22 [2] : vector<1x8x8xf32> to vector<1x8xf32>
    %55 = vector.shape_cast %54 : vector<1x8xf32> to vector<1x8x1xf32>
    %56 = vector.broadcast %55 : vector<1x8x1xf32> to vector<1x8x8xf32>
    %57 = arith.subf %53, %56 : vector<1x8x8xf32>
    %58 = math.exp %57 : vector<1x8x8xf32>
    %cst_23 = arith.constant dense<0.000000e+00> : vector<1x8xf32>
    %59 = vector.multi_reduction <add>, %58, %cst_23 [2] : vector<1x8x8xf32> to vector<1x8xf32>
    %60 = vector.shape_cast %59 : vector<1x8xf32> to vector<1x8x1xf32>
    %61 = tpu.reciprocal %60 {approx = true} : vector<1x8x1xf32> -> vector<1x8x1xf32>
    %62 = vector.broadcast %61 : vector<1x8x1xf32> to vector<1x8x8xf32>
    %63 = arith.mulf %58, %62 : vector<1x8x8xf32>
    %64 = arith.truncf %63 : vector<1x8x8xf32> to vector<1x8x8xbf16>
    "tpu.trace_start"() <{level = 10 : i32, message = "bqk,bkd->bqd"}> : () -> ()
    %cst_24 = arith.constant dense<0.000000e+00> : vector<1x8x8xf32>
    %65 = tpu.matmul %64, %52, %cst_24 {dimension_numbers = #tpu.dot_dimension_numbers<[2], [1], [1], [2], [0, 0, 0, 1, 1, 2], [0], [0]>} : vector<1x8x8xbf16>, vector<1x8x8xbf16>, vector<1x8x8xf32> -> vector<1x8x8xf32>
    "tpu.trace_stop"() : () -> ()
    %66 = vector.shape_cast %65 : vector<1x8x8xf32> to vector<8x8xf32>
    %67 = vector.extract_strided_slice %38 {offsets = [0, 8], sizes = [8, 8], strides = [1, 1]} : vector<8x32xbf16> to vector<8x8xbf16>
    %68 = vector.shape_cast %67 : vector<8x8xbf16> to vector<1x8x8xbf16>
    %69 = vector.extract_strided_slice %42 {offsets = [0, 8], sizes = [8, 8], strides = [1, 1]} : vector<8x32xbf16> to vector<8x8xbf16>
    %70 = vector.shape_cast %69 : vector<8x8xbf16> to vector<1x8x8xbf16>
    %71 = vector.extract_strided_slice %46 {offsets = [0, 8], sizes = [8, 8], strides = [1, 1]} : vector<8x32xbf16> to vector<8x8xbf16>
    %72 = vector.shape_cast %71 : vector<8x8xbf16> to vector<1x8x8xbf16>
    "tpu.trace_start"() <{level = 10 : i32, message = "bqd,bkd->bqk"}> : () -> ()
    %cst_25 = arith.constant dense<0.000000e+00> : vector<1x8x8xf32>
    %73 = tpu.matmul %68, %70, %cst_25 {dimension_numbers = #tpu.dot_dimension_numbers<[2], [2], [1], [1], [0, 0, 0, 1, 1, 1], [0], [0]>} : vector<1x8x8xbf16>, vector<1x8x8xbf16>, vector<1x8x8xf32> -> vector<1x8x8xf32>
    "tpu.trace_stop"() : () -> ()
    %cst_26 = arith.constant dense<0xFF800000> : vector<1x8xf32>
    %74 = vector.multi_reduction <maximumf>, %73, %cst_26 [2] : vector<1x8x8xf32> to vector<1x8xf32>
    %75 = vector.shape_cast %74 : vector<1x8xf32> to vector<1x8x1xf32>
    %76 = vector.broadcast %75 : vector<1x8x1xf32> to vector<1x8x8xf32>
    %77 = arith.subf %73, %76 : vector<1x8x8xf32>
    %78 = math.exp %77 : vector<1x8x8xf32>
    %cst_27 = arith.constant dense<0.000000e+00> : vector<1x8xf32>
    %79 = vector.multi_reduction <add>, %78, %cst_27 [2] : vector<1x8x8xf32> to vector<1x8xf32>
    %80 = vector.shape_cast %79 : vector<1x8xf32> to vector<1x8x1xf32>
    %81 = tpu.reciprocal %80 {approx = true} : vector<1x8x1xf32> -> vector<1x8x1xf32>
    %82 = vector.broadcast %81 : vector<1x8x1xf32> to vector<1x8x8xf32>
    %83 = arith.mulf %78, %82 : vector<1x8x8xf32>
    %84 = arith.truncf %83 : vector<1x8x8xf32> to vector<1x8x8xbf16>
    "tpu.trace_start"() <{level = 10 : i32, message = "bqk,bkd->bqd"}> : () -> ()
    %cst_28 = arith.constant dense<0.000000e+00> : vector<1x8x8xf32>
    %85 = tpu.matmul %84, %72, %cst_28 {dimension_numbers = #tpu.dot_dimension_numbers<[2], [1], [1], [2], [0, 0, 0, 1, 1, 2], [0], [0]>} : vector<1x8x8xbf16>, vector<1x8x8xbf16>, vector<1x8x8xf32> -> vector<1x8x8xf32>
    "tpu.trace_stop"() : () -> ()
    %86 = vector.shape_cast %85 : vector<1x8x8xf32> to vector<8x8xf32>
    %87 = vector.extract_strided_slice %38 {offsets = [0, 16], sizes = [8, 8], strides = [1, 1]} : vector<8x32xbf16> to vector<8x8xbf16>
    %88 = vector.shape_cast %87 : vector<8x8xbf16> to vector<1x8x8xbf16>
    %89 = vector.extract_strided_slice %42 {offsets = [0, 16], sizes = [8, 8], strides = [1, 1]} : vector<8x32xbf16> to vector<8x8xbf16>
    %90 = vector.shape_cast %89 : vector<8x8xbf16> to vector<1x8x8xbf16>
    %91 = vector.extract_strided_slice %46 {offsets = [0, 16], sizes = [8, 8], strides = [1, 1]} : vector<8x32xbf16> to vector<8x8xbf16>
    %92 = vector.shape_cast %91 : vector<8x8xbf16> to vector<1x8x8xbf16>
    "tpu.trace_start"() <{level = 10 : i32, message = "bqd,bkd->bqk"}> : () -> ()
    %cst_29 = arith.constant dense<0.000000e+00> : vector<1x8x8xf32>
    %93 = tpu.matmul %88, %90, %cst_29 {dimension_numbers = #tpu.dot_dimension_numbers<[2], [2], [1], [1], [0, 0, 0, 1, 1, 1], [0], [0]>} : vector<1x8x8xbf16>, vector<1x8x8xbf16>, vector<1x8x8xf32> -> vector<1x8x8xf32>
    "tpu.trace_stop"() : () -> ()
    %cst_30 = arith.constant dense<0xFF800000> : vector<1x8xf32>
    %94 = vector.multi_reduction <maximumf>, %93, %cst_30 [2] : vector<1x8x8xf32> to vector<1x8xf32>
    %95 = vector.shape_cast %94 : vector<1x8xf32> to vector<1x8x1xf32>
    %96 = vector.broadcast %95 : vector<1x8x1xf32> to vector<1x8x8xf32>
    %97 = arith.subf %93, %96 : vector<1x8x8xf32>
    %98 = math.exp %97 : vector<1x8x8xf32>
    %cst_31 = arith.constant dense<0.000000e+00> : vector<1x8xf32>
    %99 = vector.multi_reduction <add>, %98, %cst_31 [2] : vector<1x8x8xf32> to vector<1x8xf32>
    %100 = vector.shape_cast %99 : vector<1x8xf32> to vector<1x8x1xf32>
    %101 = tpu.reciprocal %100 {approx = true} : vector<1x8x1xf32> -> vector<1x8x1xf32>
    %102 = vector.broadcast %101 : vector<1x8x1xf32> to vector<1x8x8xf32>
    %103 = arith.mulf %98, %102 : vector<1x8x8xf32>
    %104 = arith.truncf %103 : vector<1x8x8xf32> to vector<1x8x8xbf16>
    "tpu.trace_start"() <{level = 10 : i32, message = "bqk,bkd->bqd"}> : () -> ()
    %cst_32 = arith.constant dense<0.000000e+00> : vector<1x8x8xf32>
    %105 = tpu.matmul %104, %92, %cst_32 {dimension_numbers = #tpu.dot_dimension_numbers<[2], [1], [1], [2], [0, 0, 0, 1, 1, 2], [0], [0]>} : vector<1x8x8xbf16>, vector<1x8x8xbf16>, vector<1x8x8xf32> -> vector<1x8x8xf32>
    "tpu.trace_stop"() : () -> ()
    %106 = vector.shape_cast %105 : vector<1x8x8xf32> to vector<8x8xf32>
    %107 = vector.extract_strided_slice %38 {offsets = [0, 24], sizes = [8, 8], strides = [1, 1]} : vector<8x32xbf16> to vector<8x8xbf16>
    %108 = vector.shape_cast %107 : vector<8x8xbf16> to vector<1x8x8xbf16>
    %109 = vector.extract_strided_slice %42 {offsets = [0, 24], sizes = [8, 8], strides = [1, 1]} : vector<8x32xbf16> to vector<8x8xbf16>
    %110 = vector.shape_cast %109 : vector<8x8xbf16> to vector<1x8x8xbf16>
    %111 = vector.extract_strided_slice %46 {offsets = [0, 24], sizes = [8, 8], strides = [1, 1]} : vector<8x32xbf16> to vector<8x8xbf16>
    %112 = vector.shape_cast %111 : vector<8x8xbf16> to vector<1x8x8xbf16>
    "tpu.trace_start"() <{level = 10 : i32, message = "bqd,bkd->bqk"}> : () -> ()
    %cst_33 = arith.constant dense<0.000000e+00> : vector<1x8x8xf32>
    %113 = tpu.matmul %108, %110, %cst_33 {dimension_numbers = #tpu.dot_dimension_numbers<[2], [2], [1], [1], [0, 0, 0, 1, 1, 1], [0], [0]>} : vector<1x8x8xbf16>, vector<1x8x8xbf16>, vector<1x8x8xf32> -> vector<1x8x8xf32>
    "tpu.trace_stop"() : () -> ()
    %cst_34 = arith.constant dense<0xFF800000> : vector<1x8xf32>
    %114 = vector.multi_reduction <maximumf>, %113, %cst_34 [2] : vector<1x8x8xf32> to vector<1x8xf32>
    %115 = vector.shape_cast %114 : vector<1x8xf32> to vector<1x8x1xf32>
    %116 = vector.broadcast %115 : vector<1x8x1xf32> to vector<1x8x8xf32>
    %117 = arith.subf %113, %116 : vector<1x8x8xf32>
    %118 = math.exp %117 : vector<1x8x8xf32>
    %cst_35 = arith.constant dense<0.000000e+00> : vector<1x8xf32>
    %119 = vector.multi_reduction <add>, %118, %cst_35 [2] : vector<1x8x8xf32> to vector<1x8xf32>
    %120 = vector.shape_cast %119 : vector<1x8xf32> to vector<1x8x1xf32>
    %121 = tpu.reciprocal %120 {approx = true} : vector<1x8x1xf32> -> vector<1x8x1xf32>
    %122 = vector.broadcast %121 : vector<1x8x1xf32> to vector<1x8x8xf32>
    %123 = arith.mulf %118, %122 : vector<1x8x8xf32>
    %124 = arith.truncf %123 : vector<1x8x8xf32> to vector<1x8x8xbf16>
    "tpu.trace_start"() <{level = 10 : i32, message = "bqk,bkd->bqd"}> : () -> ()
    %cst_36 = arith.constant dense<0.000000e+00> : vector<1x8x8xf32>
    %125 = tpu.matmul %124, %112, %cst_36 {dimension_numbers = #tpu.dot_dimension_numbers<[2], [1], [1], [2], [0, 0, 0, 1, 1, 2], [0], [0]>} : vector<1x8x8xbf16>, vector<1x8x8xbf16>, vector<1x8x8xf32> -> vector<1x8x8xf32>
    "tpu.trace_stop"() : () -> ()
    %126 = vector.shape_cast %125 : vector<1x8x8xf32> to vector<8x8xf32>
    %127 = tpu.concatenate %66, %86, %106, %126 in 1 : vector<8x8xf32>, vector<8x8xf32>, vector<8x8xf32>, vector<8x8xf32> -> vector<8x32xf32>
    %128 = arith.truncf %127 : vector<8x32xf32> to vector<8x32xbf16>
    %c0_37 = arith.constant 0 : index
    %c0_38 = arith.constant 0 : index
    %c0_39 = arith.constant 0 : index
    %129 = vector.load %arg7[%c0_37, %c0_38, %c0_39] : memref<1x32x32xbf16, #tpu.memory_space<vmem>>, vector<1x32x32xbf16>
    %130 = vector.shape_cast %129 : vector<1x32x32xbf16> to vector<32x32xbf16>
    %cst_40 = arith.constant dense<0.000000e+00> : vector<8x32xf32>
    %131 = tpu.matmul %128, %130, %cst_40 {dimension_numbers = #tpu.dot_dimension_numbers<[1], [0], [0], [1], [0, 0, 1, 1], [], []>} : vector<8x32xbf16>, vector<32x32xbf16>, vector<8x32xf32> -> vector<8x32xf32>
    %132 = vector.broadcast %8 : vector<1x32xf32> to vector<8x32xf32>
    %133 = arith.addf %131, %132 : vector<8x32xf32>
    %134 = arith.addf %3, %133 : vector<8x32xf32>
    %cst_41 = arith.constant dense<0.000000e+00> : vector<8xf32>
    %135 = vector.multi_reduction <add>, %134, %cst_41 [1] : vector<8x32xf32> to vector<8xf32>
    %136 = vector.shape_cast %135 : vector<8xf32> to vector<8x1xf32>
    %cst_42 = arith.constant 3.200000e+01 : f32
    %137 = vector.broadcast %cst_42 : f32 to vector<8x1xf32>
    %138 = arith.divf %136, %137 : vector<8x1xf32>
    %139 = vector.broadcast %138 : vector<8x1xf32> to vector<8x32xf32>
    %140 = arith.subf %134, %139 : vector<8x32xf32>
    %141 = arith.mulf %140, %140 : vector<8x32xf32>
    %cst_43 = arith.constant dense<0.000000e+00> : vector<8xf32>
    %142 = vector.multi_reduction <add>, %141, %cst_43 [1] : vector<8x32xf32> to vector<8xf32>
    %143 = vector.shape_cast %142 : vector<8xf32> to vector<8x1xf32>
    %cst_44 = arith.constant 3.200000e+01 : f32
    %144 = vector.broadcast %cst_44 : f32 to vector<8x1xf32>
    %145 = arith.divf %143, %144 : vector<8x1xf32>
    %146 = vector.broadcast %138 : vector<8x1xf32> to vector<8x32xf32>
    %147 = arith.subf %134, %146 : vector<8x32xf32>
    %cst_45 = arith.constant 9.99999974E-6 : f32
    %148 = vector.broadcast %cst_45 : f32 to vector<8x1xf32>
    %149 = arith.addf %145, %148 : vector<8x1xf32>
    %150 = math.rsqrt %149 : vector<8x1xf32>
    %151 = vector.broadcast %150 : vector<8x1xf32> to vector<8x32xf32>
    %152 = arith.mulf %147, %151 : vector<8x32xf32>
    %153 = vector.broadcast %9 : vector<1x32xf32> to vector<8x32xf32>
    %154 = arith.mulf %152, %153 : vector<8x32xf32>
    %155 = vector.broadcast %10 : vector<1x32xf32> to vector<8x32xf32>
    %156 = arith.addf %154, %155 : vector<8x32xf32>
    %157 = arith.truncf %156 : vector<8x32xf32> to vector<8x32xbf16>
    %c0_46 = arith.constant 0 : index
    %c0_47 = arith.constant 0 : index
    %c0_48 = arith.constant 0 : index
    %158 = vector.load %arg8[%c0_46, %c0_47, %c0_48] : memref<1x32x128xbf16, #tpu.memory_space<vmem>>, vector<1x32x128xbf16>
    %159 = vector.shape_cast %158 : vector<1x32x128xbf16> to vector<32x128xbf16>
    %cst_49 = arith.constant dense<0.000000e+00> : vector<8x128xf32>
    %160 = tpu.matmul %157, %159, %cst_49 {dimension_numbers = #tpu.dot_dimension_numbers<[1], [0], [0], [1], [0, 0, 1, 1], [], []>} : vector<8x32xbf16>, vector<32x128xbf16>, vector<8x128xf32> -> vector<8x128xf32>
    %c0_50 = arith.constant 0 : index
    %c0_51 = arith.constant 0 : index
    %c0_52 = arith.constant 0 : index
    %161 = vector.load %arg9[%c0_50, %c0_51, %c0_52] : memref<1x1x128xf32, #tpu.memory_space<vmem>>, vector<1x1x128xf32>
    %162 = vector.shape_cast %161 : vector<1x1x128xf32> to vector<1x128xf32>
    %163 = vector.broadcast %162 : vector<1x128xf32> to vector<8x128xf32>
    %164 = arith.addf %160, %163 : vector<8x128xf32>
    %cst_53 = arith.constant 5.000000e-01 : f32
    %165 = vector.broadcast %cst_53 : f32 to vector<8x128xf32>
    %166 = arith.mulf %165, %164 : vector<8x128xf32>
    %cst_54 = arith.constant 0.707106769 : f32
    %167 = vector.broadcast %cst_54 : f32 to vector<8x128xf32>
    %168 = arith.mulf %164, %167 : vector<8x128xf32>
    %169 = math.erf %168 : vector<8x128xf32>
    %cst_55 = arith.constant 1.000000e+00 : f32
    %170 = vector.broadcast %cst_55 : f32 to vector<8x128xf32>
    %171 = arith.addf %170, %169 : vector<8x128xf32>
    %172 = arith.mulf %166, %171 : vector<8x128xf32>
    %173 = arith.truncf %172 : vector<8x128xf32> to vector<8x128xbf16>
    %c0_56 = arith.constant 0 : index
    %c0_57 = arith.constant 0 : index
    %c0_58 = arith.constant 0 : index
    %174 = vector.load %arg10[%c0_56, %c0_57, %c0_58] : memref<1x128x32xbf16, #tpu.memory_space<vmem>>, vector<1x128x32xbf16>
    %175 = vector.shape_cast %174 : vector<1x128x32xbf16> to vector<128x32xbf16>
    %cst_59 = arith.constant dense<0.000000e+00> : vector<8x32xf32>
    %176 = tpu.matmul %173, %175, %cst_59 {dimension_numbers = #tpu.dot_dimension_numbers<[1], [0], [0], [1], [0, 0, 1, 1], [], []>} : vector<8x128xbf16>, vector<128x32xbf16>, vector<8x32xf32> -> vector<8x32xf32>
    %177 = vector.broadcast %11 : vector<1x32xf32> to vector<8x32xf32>
    %178 = arith.addf %176, %177 : vector<8x32xf32>
    %179 = arith.addf %134, %178 : vector<8x32xf32>
    %c1_i32 = arith.constant 1 : i32
    %180 = arith.cmpi ne, %arg1, %c1_i32 : i32
    %181 = arith.extui %180 : i1 to i32
    %c0_i32_60 = arith.constant 0 : i32
    %182 = arith.cmpi ne, %181, %c0_i32_60 : i32
    scf.if %182 {
      %c0_63 = arith.constant 0 : index
      %c0_64 = arith.constant 0 : index
      %186 = vector.load %arg12[%c0_63, %c0_64] : memref<8x32xf32, #tpu.memory_space<vmem>>, vector<8x32xf32>
      tpu.vector_store %arg12[%c0_63, %c0_64], %179 {strides = array<i32>} : memref<8x32xf32, #tpu.memory_space<vmem>>, vector<8x32xf32>,
    } else {
    }
    %c1_i32_61 = arith.constant 1 : i32
    %183 = arith.cmpi eq, %arg1, %c1_i32_61 : i32
    %184 = arith.extui %183 : i1 to i32
    %c0_i32_62 = arith.constant 0 : i32
    %185 = arith.cmpi ne, %184, %c0_i32_62 : i32
    scf.if %185 {
      %c0_63 = arith.constant 0 : index
      %c0_64 = arith.constant 0 : index
      %186 = vector.load %arg11[%c0_63, %c0_64] : memref<2x32xf32, #tpu.memory_space<vmem>>, vector<2x32xf32>
      %187 = vector.extract_strided_slice %186 {offsets = [0, 0], sizes = [1, 32], strides = [1, 1]} : vector<2x32xf32> to vector<1x32xf32>
      %188 = vector.extract_strided_slice %186 {offsets = [1, 0], sizes = [1, 32], strides = [1, 1]} : vector<2x32xf32> to vector<1x32xf32>
      %cst_65 = arith.constant dense<0.000000e+00> : vector<8xf32>
      %189 = vector.multi_reduction <add>, %179, %cst_65 [1] : vector<8x32xf32> to vector<8xf32>
      %190 = vector.shape_cast %189 : vector<8xf32> to vector<8x1xf32>
      %cst_66 = arith.constant 3.200000e+01 : f32
      %191 = vector.broadcast %cst_66 : f32 to vector<8x1xf32>
      %192 = arith.divf %190, %191 : vector<8x1xf32>
      %193 = vector.broadcast %192 : vector<8x1xf32> to vector<8x32xf32>
      %194 = arith.subf %179, %193 : vector<8x32xf32>
      %195 = arith.mulf %194, %194 : vector<8x32xf32>
      %cst_67 = arith.constant dense<0.000000e+00> : vector<8xf32>
      %196 = vector.multi_reduction <add>, %195, %cst_67 [1] : vector<8x32xf32> to vector<8xf32>
      %197 = vector.shape_cast %196 : vector<8xf32> to vector<8x1xf32>
      %cst_68 = arith.constant 3.200000e+01 : f32
      %198 = vector.broadcast %cst_68 : f32 to vector<8x1xf32>
      %199 = arith.divf %197, %198 : vector<8x1xf32>
      %200 = vector.broadcast %192 : vector<8x1xf32> to vector<8x32xf32>
      %201 = arith.subf %179, %200 : vector<8x32xf32>
      %cst_69 = arith.constant 9.99999974E-6 : f32
      %202 = vector.broadcast %cst_69 : f32 to vector<8x1xf32>
      %203 = arith.addf %199, %202 : vector<8x1xf32>
      %204 = math.rsqrt %203 : vector<8x1xf32>
      %205 = vector.broadcast %204 : vector<8x1xf32> to vector<8x32xf32>
      %206 = arith.mulf %201, %205 : vector<8x32xf32>
      %207 = vector.broadcast %187 : vector<1x32xf32> to vector<8x32xf32>
      %208 = arith.mulf %206, %207 : vector<8x32xf32>
      %209 = vector.broadcast %188 : vector<1x32xf32> to vector<8x32xf32>
      %210 = arith.addf %208, %209 : vector<8x32xf32>
      %c0_70 = arith.constant 0 : index
      %c0_71 = arith.constant 0 : index
      %211 = vector.load %arg12[%c0_70, %c0_71] : memref<8x32xf32, #tpu.memory_space<vmem>>, vector<8x32xf32>
      tpu.vector_store %arg12[%c0_70, %c0_71], %210 {strides = array<i32>} : memref<8x32xf32, #tpu.memory_space<vmem>>, vector<8x32xf32>,
    } else {
    }
    return
  }
  func.func @transform_1(%arg0: i32, %arg1: i32) -> (i32, i32, i32) {
    %c0_i32 = arith.constant 0 : i32
    %c0_i32_0 = arith.constant 0 : i32
    %c0_i32_1 = arith.constant 0 : i32
    return %arg1, %c0_i32, %c0_i32_0 : i32, i32, i32
  }
  func.func @transform_2(%arg0: i32, %arg1: i32) -> (i32, i32, i32) {
    %c0_i32 = arith.constant 0 : i32
    %c0_i32_0 = arith.constant 0 : i32
    %c0_i32_1 = arith.constant 0 : i32
    return %arg1, %c0_i32, %c0_i32_0 : i32, i32, i32
  }
  func.func @transform_3(%arg0: i32, %arg1: i32) -> (i32, i32, i32) {
    %c0_i32 = arith.constant 0 : i32
    %c0_i32_0 = arith.constant 0 : i32
    %c0_i32_1 = arith.constant 0 : i32
    return %arg1, %c0_i32, %c0_i32_0 : i32, i32, i32
  }
  func.func @transform_4(%arg0: i32, %arg1: i32) -> (i32, i32, i32) {
    %c0_i32 = arith.constant 0 : i32
    %c0_i32_0 = arith.constant 0 : i32
    %c0_i32_1 = arith.constant 0 : i32
    return %arg1, %c0_i32, %c0_i32_0 : i32, i32, i32
  }
  func.func @transform_5(%arg0: i32, %arg1: i32) -> (i32, i32, i32) {
    %c0_i32 = arith.constant 0 : i32
    %c0_i32_0 = arith.constant 0 : i32
    %c0_i32_1 = arith.constant 0 : i32
    return %arg1, %c0_i32, %c0_i32_0 : i32, i32, i32
  }
  func.func @transform_6(%arg0: i32, %arg1: i32) -> (i32, i32, i32) {
    %c0_i32 = arith.constant 0 : i32
    %c0_i32_0 = arith.constant 0 : i32
    %c0_i32_1 = arith.constant 0 : i32
    return %arg1, %c0_i32, %c0_i32_0 : i32, i32, i32
  }
  func.func @transform_7(%arg0: i32, %arg1: i32) -> (i32, i32, i32) {
    %c0_i32 = arith.constant 0 : i32
    %c0_i32_0 = arith.constant 0 : i32
    %c0_i32_1 = arith.constant 0 : i32
    return %arg1, %c0_i32, %c0_i32_0 : i32, i32, i32
  }
  func.func @transform_8(%arg0: i32, %arg1: i32) -> (i32, i32, i32) {
    %c0_i32 = arith.constant 0 : i32
    %c0_i32_0 = arith.constant 0 : i32
    %c0_i32_1 = arith.constant 0 : i32
    return %arg1, %c0_i32, %c0_i32_0 : i32, i32, i32
  }
  func.func @transform_9(%arg0: i32, %arg1: i32) -> (i32, i32) {
    %c0_i32 = arith.constant 0 : i32
    %c0_i32_0 = arith.constant 0 : i32
    %c0_i32_1 = arith.constant 0 : i32
    return %c0_i32, %c0_i32_0 : i32, i32
  }
  func.func @transform_10(%arg0: i32, %arg1: i32) -> (i32, i32) {
    %c0_i32 = arith.constant 0 : i32
    %c0_i32_0 = arith.constant 0 : i32
    return %arg0, %c0_i32 : i32, i32
  }
}

</mosaic_0001>

<llo_original>
// kernel: bert_embedder_forward.1
$region0: #{bert_embedder_forward.1}
  #allocation0 [shape = 'u32[]', space=smem, size = 0x4, offset = 0x4, fixed_abs, tag = 'smem constant byte address 0x4 - core index']
  #allocation1 [shape = 'u32[144,128]{1,0:T(1,128)}', space=vmem, size = 0x12000, scoped, tag = 'internal scratch']
  #allocation3 [shape = 's32[]', space=sflag, size = 0x4, offset = 0, fixed_abs, tag = 'sflag constant byte address 0x0 - dummy sync flag']
  %s0 = inlined_call_operand.vmem [shape: f32[16,32], index: 0, kind: input, shape index: {}, may-alias: {0,10}]
  %s1 = inlined_call_operand.vmem [shape: f32[2,6,32], index: 1, kind: input, shape index: {}]
  %s2 = inlined_call_operand.vmem [shape: bf16[2,32,32], index: 2, kind: input, shape index: {}]
  %s3 = inlined_call_operand.vmem [shape: bf16[2,32,32], index: 3, kind: input, shape index: {}]
  %s4 = inlined_call_operand.vmem [shape: bf16[2,32,32], index: 4, kind: input, shape index: {}]
  %s5 = inlined_call_operand.vmem [shape: bf16[2,32,32], index: 5, kind: input, shape index: {}]
  %s6 = inlined_call_operand.vmem [shape: bf16[2,32,128], index: 6, kind: input, shape index: {}]
  %s7 = inlined_call_operand.vmem [shape: f32[2,1,128], index: 7, kind: input, shape index: {}]
  %s8 = inlined_call_operand.vmem [shape: bf16[2,128,32], index: 8, kind: input, shape index: {}]
  %s9 = inlined_call_operand.vmem [shape: f32[2,32], index: 9, kind: input, shape index: {}]
  %s10 = inlined_call_operand.vmem [shape: f32[16,32], index: 10, kind: output, shape index: {}, may-alias: {0,10}]
  %s11 = sld [smem:[#allocation0]]
  $region116: #{bert_embedder_forward.1} parent=0
    _
  %s13 = ssub.s32 1, %s11
  %s14 = scalar_select 0, %s13, %s11
  loop: start=0, step=1, limit=6
  $region2: #{bert_embedder_forward.1} parent=0 // loop_pre_header
    _
  $region3: #{bert_embedder_forward.1} parent=0 // loop_header
    %s16 = sphi 0, %s20
    %p17 = scmp.ge.s32.totalorder %s16, 6
    %s23 = sphi 0, %s35
    %s24 = sphi 0, %s31
    %s25 = sphi 0, %s23
    %s26 = sphi 0, %s24
    %s27 = sphi 0, %s25
    %s28 = sphi 0, %s26
    %s38 = sphi 0, %s40
    %s41 = sphi 0, %s38
    %s42 = sphi 0, %s41
    %s58 = sphi 0, %s42
    %s64 = sphi 0, %s66
    %s67 = sphi 0, %s64
    %s68 = sphi 0, %s67
    %s84 = sphi 0, %s68
    %s90 = sphi 0, %s92
    %s93 = sphi 0, %s90
    %s94 = sphi 0, %s93
    %s110 = sphi 0, %s94
    %s116 = sphi 0, %s118
    %s119 = sphi 0, %s116
    %s120 = sphi 0, %s119
    %s136 = sphi 0, %s120
    %s142 = sphi 0, %s144
    %s145 = sphi 0, %s142
    %s146 = sphi 0, %s145
    %s162 = sphi 0, %s146
    %s168 = sphi 0, %s170
    %s171 = sphi 0, %s168
    %s172 = sphi 0, %s171
    %s188 = sphi 0, %s172
    %s194 = sphi 0, %s196
    %s197 = sphi 0, %s194
    %s198 = sphi 0, %s197
    %s214 = sphi 0, %s198
    %s220 = sphi 0, %s222
    %s223 = sphi 0, %s220
    %s224 = sphi 0, %s223
    %s240 = sphi 0, %s224
    %s244 = sphi 0, %s244
    %s246 = sphi 0, %s244
    %s247 = sphi 0, %s246
    %s261 = sphi 0, %s247
    %s267 = sphi 0, %s269
    %s270 = sphi 0, %s267
    %s271 = sphi 0, %s270
    %s287 = sphi 0, %s271
  $region4: #{bert_embedder_forward.1} parent=0 // loop_header_branch
    %19 = sbr.rel (%p17) target = $region8
  $region5: #{bert_embedder_forward.1} parent=0 // loop_body
    %s21 = ssub.s32 %s16, 1
    %s22 = ssub.s32 %s16, 2
    %s29 = sadd.s32 1, %s24
    %p30 = scmp.ge.s32.totalorder %s29, 2
    %s31 = scalar_select %p30, 0, %s29
    %s32 = sadd.s32 1, %s23
    %s33 = scalar_select %p30, %s32, %s23
    %p34 = scmp.ge.s32.totalorder %s33, 2
    %s35 = scalar_select %p34, 0, %s33
    %s36 = ssub.s32 %s24, %s31
    %p37 = scmp.eq.s32.totalorder %s36, 0
    %s39 = sadd.s32 %s38, 1
    %s40 = scalar_select %p37, %s38, %s39
    %p43 = pneg %p37
    %p44 = scmp.eq.s32.totalorder %s16, 3
    %p45 = por %p43, %p44
    %p46 = scmp.ne.s32.totalorder %s38, %s41
    %p47 = scmp.eq.s32.totalorder %s16, 0
    %p48 = por %p46, %p47
    %p49 = scmp.ne.s32.totalorder %s38, %s41
    %p50 = scmp.eq.s32.totalorder %s21, 3
    %p51 = por %p49, %p50
    %p52 = scmp.ne.s32.totalorder %s41, %s42
    %p53 = scmp.eq.s32.totalorder %s21, 0
    %p54 = por %p52, %p53
    %p55 = scmp.ne.s32.totalorder %s41, %s42
    %p56 = scmp.eq.s32.totalorder %s22, 3
    %p57 = por %p55, %p56
    %p59 = scmp.ne.s32.totalorder %s42, %s58
    %p60 = scmp.eq.s32.totalorder %s22, 0
    %p61 = por %p59, %p60
    %s62 = ssub.s32 %s24, %s31
    %p63 = scmp.eq.s32.totalorder %s62, 0
    %s65 = sadd.s32 %s64, 1
    %s66 = scalar_select %p63, %s64, %s65
    %p69 = pneg %p63
    %p70 = scmp.eq.s32.totalorder %s16, 3
    %p71 = por %p69, %p70
    %p72 = scmp.ne.s32.totalorder %s64, %s67
    %p73 = scmp.eq.s32.totalorder %s16, 0
    %p74 = por %p72, %p73
    %p75 = scmp.ne.s32.totalorder %s64, %s67
    %p76 = scmp.eq.s32.totalorder %s21, 3
    %p77 = por %p75, %p76
    %p78 = scmp.ne.s32.totalorder %s67, %s68
    %p79 = scmp.eq.s32.totalorder %s21, 0
    %p80 = por %p78, %p79
    %p81 = scmp.ne.s32.totalorder %s67, %s68
    %p82 = scmp.eq.s32.totalorder %s22, 3
    %p83 = por %p81, %p82
    %p85 = scmp.ne.s32.totalorder %s68, %s84
    %p86 = scmp.eq.s32.totalorder %s22, 0
    %p87 = por %p85, %p86
    %s88 = ssub.s32 %s24, %s31
    %p89 = scmp.eq.s32.totalorder %s88, 0
    %s91 = sadd.s32 %s90, 1
    %s92 = scalar_select %p89, %s90, %s91
    %p95 = pneg %p89
    %p96 = scmp.eq.s32.totalorder %s16, 3
    %p97 = por %p95, %p96
    %p98 = scmp.ne.s32.totalorder %s90, %s93
    %p99 = scmp.eq.s32.totalorder %s16, 0
    %p100 = por %p98, %p99
    %p101 = scmp.ne.s32.totalorder %s90, %s93
    %p102 = scmp.eq.s32.totalorder %s21, 3
    %p103 = por %p101, %p102
    %p104 = scmp.ne.s32.totalorder %s93, %s94
    %p105 = scmp.eq.s32.totalorder %s21, 0
    %p106 = por %p104, %p105
    %p107 = scmp.ne.s32.totalorder %s93, %s94
    %p108 = scmp.eq.s32.totalorder %s22, 3
    %p109 = por %p107, %p108
    %p111 = scmp.ne.s32.totalorder %s94, %s110
    %p112 = scmp.eq.s32.totalorder %s22, 0
    %p113 = por %p111, %p112
    %s114 = ssub.s32 %s24, %s31
    %p115 = scmp.eq.s32.totalorder %s114, 0
    %s117 = sadd.s32 %s116, 1
    %s118 = scalar_select %p115, %s116, %s117
    %p121 = pneg %p115
    %p122 = scmp.eq.s32.totalorder %s16, 3
    %p123 = por %p121, %p122
    %p124 = scmp.ne.s32.totalorder %s116, %s119
    %p125 = scmp.eq.s32.totalorder %s16, 0
    %p126 = por %p124, %p125
    %p127 = scmp.ne.s32.totalorder %s116, %s119
    %p128 = scmp.eq.s32.totalorder %s21, 3
    %p129 = por %p127, %p128
    %p130 = scmp.ne.s32.totalorder %s119, %s120
    %p131 = scmp.eq.s32.totalorder %s21, 0
    %p132 = por %p130, %p131
    %p133 = scmp.ne.s32.totalorder %s119, %s120
    %p134 = scmp.eq.s32.totalorder %s22, 3
    %p135 = por %p133, %p134
    %p137 = scmp.ne.s32.totalorder %s120, %s136
    %p138 = scmp.eq.s32.totalorder %s22, 0
    %p139 = por %p137, %p138
    %s140 = ssub.s32 %s24, %s31
    %p141 = scmp.eq.s32.totalorder %s140, 0
    %s143 = sadd.s32 %s142, 1
    %s144 = scalar_select %p141, %s142, %s143
    %p147 = pneg %p141
    %p148 = scmp.eq.s32.totalorder %s16, 3
    %p149 = por %p147, %p148
    %p150 = scmp.ne.s32.totalorder %s142, %s145
    %p151 = scmp.eq.s32.totalorder %s16, 0
    %p152 = por %p150, %p151
    %p153 = scmp.ne.s32.totalorder %s142, %s145
    %p154 = scmp.eq.s32.totalorder %s21, 3
    %p155 = por %p153, %p154
    %p156 = scmp.ne.s32.totalorder %s145, %s146
    %p157 = scmp.eq.s32.totalorder %s21, 0
    %p158 = por %p156, %p157
    %p159 = scmp.ne.s32.totalorder %s145, %s146
    %p160 = scmp.eq.s32.totalorder %s22, 3
    %p161 = por %p159, %p160
    %p163 = scmp.ne.s32.totalorder %s146, %s162
    %p164 = scmp.eq.s32.totalorder %s22, 0
    %p165 = por %p163, %p164
    %s166 = ssub.s32 %s24, %s31
    %p167 = scmp.eq.s32.totalorder %s166, 0
    %s169 = sadd.s32 %s168, 1
    %s170 = scalar_select %p167, %s168, %s169
    %p173 = pneg %p167
    %p174 = scmp.eq.s32.totalorder %s16, 3
    %p175 = por %p173, %p174
    %p176 = scmp.ne.s32.totalorder %s168, %s171
    %p177 = scmp.eq.s32.totalorder %s16, 0
    %p178 = por %p176, %p177
    %p179 = scmp.ne.s32.totalorder %s168, %s171
    %p180 = scmp.eq.s32.totalorder %s21, 3
    %p181 = por %p179, %p180
    %p182 = scmp.ne.s32.totalorder %s171, %s172
    %p183 = scmp.eq.s32.totalorder %s21, 0
    %p184 = por %p182, %p183
    %p185 = scmp.ne.s32.totalorder %s171, %s172
    %p186 = scmp.eq.s32.totalorder %s22, 3
    %p187 = por %p185, %p186
    %p189 = scmp.ne.s32.totalorder %s172, %s188
    %p190 = scmp.eq.s32.totalorder %s22, 0
    %p191 = por %p189, %p190
    %s192 = ssub.s32 %s24, %s31
    %p193 = scmp.eq.s32.totalorder %s192, 0
    %s195 = sadd.s32 %s194, 1
    %s196 = scalar_select %p193, %s194, %s195
    %p199 = pneg %p193
    %p200 = scmp.eq.s32.totalorder %s16, 3
    %p201 = por %p199, %p200
    %p202 = scmp.ne.s32.totalorder %s194, %s197
    %p203 = scmp.eq.s32.totalorder %s16, 0
    %p204 = por %p202, %p203
    %p205 = scmp.ne.s32.totalorder %s194, %s197
    %p206 = scmp.eq.s32.totalorder %s21, 3
    %p207 = por %p205, %p206
    %p208 = scmp.ne.s32.totalorder %s197, %s198
    %p209 = scmp.eq.s32.totalorder %s21, 0
    %p210 = por %p208, %p209
    %p211 = scmp.ne.s32.totalorder %s197, %s198
    %p212 = scmp.eq.s32.totalorder %s22, 3
    %p213 = por %p211, %p212
    %p215 = scmp.ne.s32.totalorder %s198, %s214
    %p216 = scmp.eq.s32.totalorder %s22, 0
    %p217 = por %p215, %p216
    %s218 = ssub.s32 %s24, %s31
    %p219 = scmp.eq.s32.totalorder %s218, 0
    %s221 = sadd.s32 %s220, 1
    %s222 = scalar_select %p219, %s220, %s221
    %p225 = pneg %p219
    %p226 = scmp.eq.s32.totalorder %s16, 3
    %p227 = por %p225, %p226
    %p228 = scmp.ne.s32.totalorder %s220, %s223
    %p229 = scmp.eq.s32.totalorder %s16, 0
    %p230 = por %p228, %p229
    %p231 = scmp.ne.s32.totalorder %s220, %s223
    %p232 = scmp.eq.s32.totalorder %s21, 3
    %p233 = por %p231, %p232
    %p234 = scmp.ne.s32.totalorder %s223, %s224
    %p235 = scmp.eq.s32.totalorder %s21, 0
    %p236 = por %p234, %p235
    %p237 = scmp.ne.s32.totalorder %s223, %s224
    %p238 = scmp.eq.s32.totalorder %s22, 3
    %p239 = por %p237, %p238
    %p241 = scmp.ne.s32.totalorder %s224, %s240
    %p242 = scmp.eq.s32.totalorder %s22, 0
    %p243 = por %p241, %p242
    %s245 = sadd.s32 %s244, 1
    %p248 = scmp.eq.s32.totalorder %s16, 3
    %p249 = scmp.ne.s32.totalorder %s244, %s246
    %p250 = scmp.eq.s32.totalorder %s16, 0
    %p251 = por %p249, %p250
    %p252 = scmp.ne.s32.totalorder %s244, %s246
    %p253 = scmp.eq.s32.totalorder %s21, 3
    %p254 = por %p252, %p253
    %p255 = scmp.ne.s32.totalorder %s246, %s247
    %p256 = scmp.eq.s32.totalorder %s21, 0
    %p257 = por %p255, %p256
    %p258 = scmp.ne.s32.totalorder %s246, %s247
    %p259 = scmp.eq.s32.totalorder %s22, 3
    %p260 = por %p258, %p259
    %p262 = scmp.ne.s32.totalorder %s247, %s261
    %p263 = scmp.eq.s32.totalorder %s22, 0
    %p264 = por %p262, %p263
    %s265 = ssub.s32 %s23, %s35
    %p266 = scmp.eq.s32.totalorder %s265, 0
    %s268 = sadd.s32 %s267, 1
    %s269 = scalar_select %p266, %s267, %s268
    %p272 = pneg %p266
    %p273 = scmp.eq.s32.totalorder %s16, 3
    %p274 = por %p272, %p273
    %p275 = scmp.ne.s32.totalorder %s267, %s270
    %p276 = scmp.eq.s32.totalorder %s16, 0
    %p277 = por %p275, %p276
    %p278 = scmp.ne.s32.totalorder %s267, %s270
    %p279 = scmp.eq.s32.totalorder %s21, 3
    %p280 = por %p278, %p279
    %p281 = scmp.ne.s32.totalorder %s270, %s271
    %p282 = scmp.eq.s32.totalorder %s21, 0
    %p283 = por %p281, %p282
    %p284 = scmp.ne.s32.totalorder %s270, %s271
    %p285 = scmp.eq.s32.totalorder %s22, 3
    %p286 = por %p284, %p285
    %p288 = scmp.ne.s32.totalorder %s271, %s287
    %p289 = scmp.eq.s32.totalorder %s22, 0
    %p290 = por %p288, %p289
    %p291 = scmp.le.s32.totalorder 1, %s16
    %p292 = scmp.lt.s32.totalorder %s16, 5
    %p293 = pnand %p291, %p292
    %p294 = pneg %p293
    // Predicated region
    $region9: #{bert_embedder_forward.1} parent=5 // pred_check
      _
    $region10: #{bert_embedder_forward.1} parent=5 // pred_check_branch
      %296 = sbr.rel (%p293) target = $region12
    $region11: #{bert_embedder_forward.1} parent=5 // pred_region
      %s297 = ssub.s32 %s16, 1
      // Predicated region
      $region13: #{bert_embedder_forward.1} parent=11 // pred_check
        %p298 = pneg %p257
      $region14: #{bert_embedder_forward.1} parent=11 // pred_check_branch
        %300 = sbr.rel (%p298) target = $region16
      $region15: #{bert_embedder_forward.1} parent=11 // pred_region
        _
      $region16: #{bert_embedder_forward.1} parent=11 // pred_fallthru
        _
    $region12: #{bert_embedder_forward.1} parent=5 // pred_fallthru
      _
    %p301 = scmp.lt.s32.totalorder %s16, 4
    // Predicated region
    $region17: #{bert_embedder_forward.1} parent=5 // pred_check
      %p302 = pneg %p301
    $region18: #{bert_embedder_forward.1} parent=5 // pred_check_branch
      %304 = sbr.rel (%p302) target = $region20
    $region19: #{bert_embedder_forward.1} parent=5 // pred_region
      // Predicated region
      $region21: #{bert_embedder_forward.1} parent=19 // pred_check
        %p305 = pneg %p48
      $region22: #{bert_embedder_forward.1} parent=19 // pred_check_branch
        %307 = sbr.rel (%p305) target = $region24
      $region23: #{bert_embedder_forward.1} parent=19 // pred_region
        %p308 = scmp.lt.s32.totalorder %s24, 1
        %s309 = scalar_select %p308, %s24, 1
        %s310 = smul.addr %s309, 8
        %s311 = scalar_lea.vmem %s1, %s310
      $region24: #{bert_embedder_forward.1} parent=19 // pred_fallthru
        _
      // Predicated region
      $region25: #{bert_embedder_forward.1} parent=19 // pred_check
        %p312 = pneg %p74
      $region26: #{bert_embedder_forward.1} parent=19 // pred_check_branch
        %314 = sbr.rel (%p312) target = $region28
      $region27: #{bert_embedder_forward.1} parent=19 // pred_region
        %p315 = scmp.lt.s32.totalorder %s24, 1
        %s316 = scalar_select %p315, %s24, 1
        %s317 = smul.addr %s316, 4
        %s318 = smul.addr %s317, 4
        %s319 = scalar_lea.vmem %s2, %s318
      $region28: #{bert_embedder_forward.1} parent=19 // pred_fallthru
        _
      // Predicated region
      $region29: #{bert_embedder_forward.1} parent=19 // pred_check
        %p320 = pneg %p100
      $region30: #{bert_embedder_forward.1} parent=19 // pred_check_branch
        %322 = sbr.rel (%p320) target = $region32
      $region31: #{bert_embedder_forward.1} parent=19 // pred_region
        %p323 = scmp.lt.s32.totalorder %s24, 1
        %s324 = scalar_select %p323, %s24, 1
        %s325 = smul.addr %s324, 4
        %s326 = smul.addr %s325, 4
        %s327 = scalar_lea.vmem %s3, %s326
      $region32: #{bert_embedder_forward.1} parent=19 // pred_fallthru
        _
      // Predicated region
      $region33: #{bert_embedder_forward.1} parent=19 // pred_check
        %p328 = pneg %p126
      $region34: #{bert_embedder_forward.1} parent=19 // pred_check_branch
        %330 = sbr.rel (%p328) target = $region36
      $region35: #{bert_embedder_forward.1} parent=19 // pred_region
        %p331 = scmp.lt.s32.totalorder %s24, 1
        %s332 = scalar_select %p331, %s24, 1
        %s333 = smul.addr %s332, 4
        %s334 = smul.addr %s333, 4
        %s335 = scalar_lea.vmem %s4, %s334
      $region36: #{bert_embedder_forward.1} parent=19 // pred_fallthru
        _
      // Predicated region
      $region37: #{bert_embedder_forward.1} parent=19 // pred_check
        %p336 = pneg %p152
      $region38: #{bert_embedder_forward.1} parent=19 // pred_check_branch
        %338 = sbr.rel (%p336) target = $region40
      $region39: #{bert_embedder_forward.1} parent=19 // pred_region
        %p339 = scmp.lt.s32.totalorder %s24, 1
        %s340 = scalar_select %p339, %s24, 1
        %s341 = smul.addr %s340, 4
        %s342 = smul.addr %s341, 4
        %s343 = scalar_lea.vmem %s5, %s342
      $region40: #{bert_embedder_forward.1} parent=19 // pred_fallthru
        _
      // Predicated region
      $region41: #{bert_embedder_forward.1} parent=19 // pred_check
        %p344 = pneg %p178
      $region42: #{bert_embedder_forward.1} parent=19 // pred_check_branch
        %346 = sbr.rel (%p344) target = $region44
      $region43: #{bert_embedder_forward.1} parent=19 // pred_region
        %p347 = scmp.lt.s32.totalorder %s24, 1
        %s348 = scalar_select %p347, %s24, 1
        %s349 = smul.addr %s348, 4
        %s350 = smul.addr %s349, 4
        %s351 = scalar_lea.vmem %s6, %s350
      $region44: #{bert_embedder_forward.1} parent=19 // pred_fallthru
        _
      // Predicated region
      $region45: #{bert_embedder_forward.1} parent=19 // pred_check
        %p352 = pneg %p204
      $region46: #{bert_embedder_forward.1} parent=19 // pred_check_branch
        %354 = sbr.rel (%p352) target = $region48
      $region47: #{bert_embedder_forward.1} parent=19 // pred_region
        %p355 = scmp.lt.s32.totalorder %s24, 1
        %s356 = scalar_select %p355, %s24, 1
        %s357 = scalar_lea.vmem %s7, %s356
      $region48: #{bert_embedder_forward.1} parent=19 // pred_fallthru
        _
      // Predicated region
      $region49: #{bert_embedder_forward.1} parent=19 // pred_check
        %p358 = pneg %p230
      $region50: #{bert_embedder_forward.1} parent=19 // pred_check_branch
        %360 = sbr.rel (%p358) target = $region52
      $region51: #{bert_embedder_forward.1} parent=19 // pred_region
        %p361 = scmp.lt.s32.totalorder %s24, 1
        %s362 = scalar_select %p361, %s24, 1
        %s363 = smul.addr %s362, 16
        %s364 = smul.addr %s363, 4
        %s365 = scalar_lea.vmem %s8, %s364
      $region52: #{bert_embedder_forward.1} parent=19 // pred_fallthru
        _
    $region20: #{bert_embedder_forward.1} parent=5 // pred_fallthru
      _
    %p366 = scmp.le.s32.totalorder 1, %s16
    %p367 = scmp.lt.s32.totalorder %s16, 5
    %p368 = pnand %p366, %p367
    %p369 = pneg %p368
    // Predicated region
    $region53: #{bert_embedder_forward.1} parent=5 // pred_check
      _
    $region54: #{bert_embedder_forward.1} parent=5 // pred_check_branch
      %371 = sbr.rel (%p368) target = $region56
    $region55: #{bert_embedder_forward.1} parent=5 // pred_region
      %s372 = ssub.s32 %s16, 1
      %p373 = scmp.lt.s32.totalorder %s26, 1
      %s374 = scalar_select %p373, %s26, 1
      %s375 = smul.addr %s374, 8
      %s376 = scalar_lea.vmem %s1, %s375
      %p377 = pneg %p54
      %p378 = pneg %p51
      %p379 = scmp.lt.s32.totalorder %s26, 1
      %s380 = scalar_select %p379, %s26, 1
      %s381 = smul.addr %s380, 4
      %s382 = smul.addr %s381, 4
      %s383 = scalar_lea.vmem %s2, %s382
      %p384 = pneg %p80
      %p385 = pneg %p77
      %p386 = scmp.lt.s32.totalorder %s26, 1
      %s387 = scalar_select %p386, %s26, 1
      %s388 = smul.addr %s387, 4
      %s389 = smul.addr %s388, 4
      %s390 = scalar_lea.vmem %s3, %s389
      %p391 = pneg %p106
      %p392 = pneg %p103
      %p393 = scmp.lt.s32.totalorder %s26, 1
      %s394 = scalar_select %p393, %s26, 1
      %s395 = smul.addr %s394, 4
      %s396 = smul.addr %s395, 4
      %s397 = scalar_lea.vmem %s4, %s396
      %p398 = pneg %p132
      %p399 = pneg %p129
      %p400 = scmp.lt.s32.totalorder %s26, 1
      %s401 = scalar_select %p400, %s26, 1
      %s402 = smul.addr %s401, 4
      %s403 = smul.addr %s402, 4
      %s404 = scalar_lea.vmem %s5, %s403
      %p405 = pneg %p158
      %p406 = pneg %p155
      %p407 = scmp.lt.s32.totalorder %s26, 1
      %s408 = scalar_select %p407, %s26, 1
      %s409 = smul.addr %s408, 4
      %s410 = smul.addr %s409, 4
      %s411 = scalar_lea.vmem %s6, %s410
      %p412 = pneg %p184
      %p413 = pneg %p181
      %p414 = scmp.lt.s32.totalorder %s26, 1
      %s415 = scalar_select %p414, %s26, 1
      %s416 = scalar_lea.vmem %s7, %s415
      %p417 = pneg %p210
      %p418 = pneg %p207
      %p419 = scmp.lt.s32.totalorder %s26, 1
      %s420 = scalar_select %p419, %s26, 1
      %s421 = smul.addr %s420, 16
      %s422 = smul.addr %s421, 4
      %s423 = scalar_lea.vmem %s8, %s422
      %p424 = pneg %p236
      %p425 = pneg %p233
      %p426 = pneg %p257
      %p427 = pneg %p254
      %p428 = pneg %p283
      %p429 = pneg %p280
      %p430 = scmp.lt.s32.totalorder %s25, 1
      %s431 = scalar_select %p430, %s25, 1
      %s432 = smul.addr %s431, 8
      %s433 = scalar_lea.vmem %s10, %s432
      %p434 = scmp.lt.s32.totalorder %s26, 1
      %s435 = scalar_select %p434, %s26, 1
      %s436 = smul.addr %s435, 8
      %s437 = scalar_lea.vmem %s1, %s436
      %p438 = scmp.lt.s32.totalorder %s26, 1
      %s439 = scalar_select %p438, %s26, 1
      %s440 = smul.addr %s439, 4
      %s441 = smul.addr %s440, 4
      %s442 = scalar_lea.vmem %s2, %s441
      %p443 = scmp.lt.s32.totalorder %s26, 1
      %s444 = scalar_select %p443, %s26, 1
      %s445 = smul.addr %s444, 4
      %s446 = smul.addr %s445, 4
      %s447 = scalar_lea.vmem %s3, %s446
      %p448 = scmp.lt.s32.totalorder %s26, 1
      %s449 = scalar_select %p448, %s26, 1
      %s450 = smul.addr %s449, 4
      %s451 = smul.addr %s450, 4
      %s452 = scalar_lea.vmem %s4, %s451
      %p453 = scmp.lt.s32.totalorder %s26, 1
      %s454 = scalar_select %p453, %s26, 1
      %s455 = smul.addr %s454, 4
      %s456 = smul.addr %s455, 4
      %s457 = scalar_lea.vmem %s5, %s456
      %p458 = scmp.lt.s32.totalorder %s26, 1
      %s459 = scalar_select %p458, %s26, 1
      %s460 = smul.addr %s459, 4
      %s461 = smul.addr %s460, 4
      %s462 = scalar_lea.vmem %s6, %s461
      %p463 = scmp.lt.s32.totalorder %s26, 1
      %s464 = scalar_select %p463, %s26, 1
      %s465 = scalar_lea.vmem %s7, %s464
      %p466 = scmp.lt.s32.totalorder %s26, 1
      %s467 = scalar_select %p466, %s26, 1
      %s468 = smul.addr %s467, 16
      %s469 = smul.addr %s468, 4
      %s470 = scalar_lea.vmem %s8, %s469
      %p471 = scmp.lt.s32.totalorder %s25, 1
      %s472 = scalar_select %p471, %s25, 1
      %s473 = smul.addr %s472, 8
      %s474 = scalar_lea.vmem %s10, %s473
      %p476 = scmp.eq.s32.totalorder %s26, 0
      // Predicated region
      $region57: #{bert_embedder_forward.1} parent=55 // pred_check
        %p477 = pneg %p476
      $region58: #{bert_embedder_forward.1} parent=55 // pred_check_branch
        %479 = sbr.rel (%p477) target = $region60
      $region59: #{bert_embedder_forward.1} parent=55 // pred_region
        %s480 = smul.u32 %s25, 8
        $region61: #{bert_embedder_forward.1} parent=59
          #allocation2 [shape = 's32[1]{0}', space=sflag, size = 0x4, scoped, tag = 'scoped memory for bert_embedder_forward.1']
          %s481 = scalar_lea.vmem %s0, %s480
          %p483 = scmp.lt.u32.totalorder 8, 8
          %p484 = pneg %p483
          // Predicated region
          $region62: #{bert_embedder_forward.1} parent=61 // pred_check
            _
          $region63: #{bert_embedder_forward.1} parent=61 // pred_check_branch
            %486 = sbr.rel (%p483) target = $region65
          $region64: #{bert_embedder_forward.1} parent=61 // pred_region
            %s502 = sand.u32 8, 7
            %p503 = scmp.eq.s32.totalorder %s502, 0
            // Predicated region
            $region77: #{bert_embedder_forward.1} parent=64 // pred_check
              %p504 = pneg %p503
            $region78: #{bert_embedder_forward.1} parent=64 // pred_check_branch
              %506 = sbr.rel (%p504) target = $region80
            $region79: #{bert_embedder_forward.1} parent=64 // pred_region
              loop: start=0, step=1, limit=1
              $region81: #{bert_embedder_forward.1} parent=79 // loop_pre_header
                _
              $region82: #{bert_embedder_forward.1} parent=79 // loop_header
                %s508 = sphi 0, %s512
                %p509 = scmp.ge.s32.totalorder %s508, 1
                %s513 = sphi %s481, %s481
                %s514 = sphi %s474, %s474
              $region83: #{bert_embedder_forward.1} parent=79 // loop_header_branch
                %511 = sbr.rel (%p509) target = $region87
              $region84: #{bert_embedder_forward.1} parent=79 // loop_body
                %v515 = vld [vmem:[%s513] sm:$0xff]
                %516 = vst [vmem:[%s514] sm:$0xff] %v515
              $region85: #{bert_embedder_forward.1} parent=79 // loop_footer
                %s512 = sadd.s32 1, %s508
              $region86: #{bert_embedder_forward.1} parent=79 // loop_footer_branch
                %507 = sbr.rel target = $region82
              $region87: #{bert_embedder_forward.1} parent=79 // loop_exit
                _
            $region80: #{bert_embedder_forward.1} parent=64 // pred_fallthru
              _
            %p517 = pneg %p503
            // Predicated region
            $region88: #{bert_embedder_forward.1} parent=64 // pred_check
              _
            $region89: #{bert_embedder_forward.1} parent=64 // pred_check_branch
              %519 = sbr.rel (%p503) target = $region91
            $region90: #{bert_embedder_forward.1} parent=64 // pred_region
              %s520 = sand.u32 8, 7
            $region91: #{bert_embedder_forward.1} parent=64 // pred_fallthru
              _
          $region65: #{bert_embedder_forward.1} parent=61 // pred_fallthru
            _
          // Predicated region
          $region66: #{bert_embedder_forward.1} parent=61 // pred_check
            %p487 = pneg %p483
          $region67: #{bert_embedder_forward.1} parent=61 // pred_check_branch
            %489 = sbr.rel (%p487) target = $region69
          $region68: #{bert_embedder_forward.1} parent=61 // pred_region
            %s490 = sshll.u32 1, 8
            %s491 = ssub.s32 %s490, 1
            loop: start=0, step=1, limit=1
            $region70: #{bert_embedder_forward.1} parent=68 // loop_pre_header
              _
            $region71: #{bert_embedder_forward.1} parent=68 // loop_header
              %s493 = sphi 0, %s497
              %p494 = scmp.ge.s32.totalorder %s493, 1
              %s498 = sphi %s481, %s481
              %s499 = sphi %s474, %s474
            $region72: #{bert_embedder_forward.1} parent=68 // loop_header_branch
              %496 = sbr.rel (%p494) target = $region76
            $region73: #{bert_embedder_forward.1} parent=68 // loop_body
              %v500 = vld [vmem:[%s498] sm:%s491]
              %501 = vst [vmem:[%s499] sm:%s491] %v500
            $region74: #{bert_embedder_forward.1} parent=68 // loop_footer
              %s497 = sadd.s32 1, %s493
            $region75: #{bert_embedder_forward.1} parent=68 // loop_footer_branch
              %492 = sbr.rel target = $region71
            $region76: #{bert_embedder_forward.1} parent=68 // loop_exit
              _
          $region69: #{bert_embedder_forward.1} parent=61 // pred_fallthru
            _
          // Predicated region
          $region92: #{bert_embedder_forward.1} parent=61 // pred_check
            _
          $region93: #{bert_embedder_forward.1} parent=61 // pred_check_branch
            %523 = sbr.rel (0) target = $region95
          $region94: #{bert_embedder_forward.1} parent=61 // pred_region
            %524 = vsyncadd [#allocation2], 128
          $region95: #{bert_embedder_forward.1} parent=61 // pred_fallthru
            _
          %s525 = smul.u32 8, 1
          %s526 = sshll.u32 %s525, 4
          %527 = dma.done [#allocation2], %s526
      $region60: #{bert_embedder_forward.1} parent=55 // pred_fallthru
        _
      %v528 = vld [vmem:[%s474] sm:$0xff]
      %v529 = vld [vmem:[%s437] sm:$0x3f]
      %vm530 = vcmask 261120
      %v531 = vsel %vm530, %v528, 0.0
      %532 = vadd.xlane.f32.xlu0 %v531
      %v533 = vpop.xlane.xlu0 %532
      %v534 = vrcp.pop 32.0
      %v535 = vmul.f32 %v533, %v534
      %v536 = vsub.f32 %v528, %v535
      %v537 = vmul.f32 %v536, %v536
      %v538 = vsel %vm530, %v537, 0.0
      %539 = vadd.xlane.f32.xlu0 %v538
      %v540 = vpop.xlane.xlu0 %539
      %v541 = vmul.f32 %v540, %v534
      %v542 = vadd.f32 %v541, 1e-05
      %v543 = vrsqrt.pop %v542
      %v544 = vmul.f32 %v536, %v543
      %v545 = vlaneseq
      %v546 = vshrl.u32 %v545, 7
      %v547 = vsub.s32 0, %v546
      %v548 = vrot.slane %v529, %v547
      %v549 = vmul.f32 %v544, %v548
      %v550 = vlaneseq
      %v551 = vshrl.u32 %v550, 7
      %v552 = vsub.s32 1, %v551
      %v553 = vrot.slane %v529, %v552
      %v554 = vadd.f32 %v549, %v553
      %v555 = vpack.c.bf16 %v554, %v554
      %v556 = vld [vmem:[%s442] sm:$0xf]
      %v557 = vld [vmem:[%s442 + $0x4] sm:$0xf]
      %v558 = vld [vmem:[%s442 + $0x8] sm:$0xf]
      %v559 = vld [vmem:[%s442 + $0xc] sm:$0xf]
      %v564 = vunpack.c.l.b16 %v556
      %v565 = vunpack.c.l.b16 %v557
      %v566 = vunpack.c.l.b16 %v558
      %v567 = vunpack.c.l.b16 %v559
      %v568 = vpack.c.b16 %v565, %v564
      %v569 = vpack.c.b16 %v567, %v566
      %v573 = vsel %vm530, %v555, 0
      %575 = vmatprep.subr.bf16.mxu0 0
      %576 = vmatpush1.bf16.msra.mxu0 0
      %577 = vmatprep.subr.bf16.mxu0 0
      %578 = vmatpush1.bf16.msra.mxu0 0
      %579 = vmatprep.subr.bf16.mxu0 0
      %580 = vmatpush1.bf16.msra.mxu0 0
      %581 = vmatprep.subr.bf16.mxu0 0
      %582 = vmatpush1.bf16.msra.mxu0 0
      %583 = vmatprep.subr.bf16.mxu0 0
      %584 = vmatpush1.bf16.msra.mxu0 0
      %585 = vmatprep.subr.bf16.mxu0 0
      %586 = vmatpush1.bf16.msra.mxu0 0
      %587 = vmatprep.subr.bf16.mxu0 0
      %588 = vmatpush1.bf16.msra.mxu0 %v569
      %589 = vmatprep.subr.bf16.mxu0 0
      %590 = vmatpush1.bf16.msra.mxu0 %v568
      %591 = vmatprep.subr.bf16.mxu0 0
      %592 = vmatpush2.bf16.msra.mxu0 0
      %593 = vmatprep.subr.bf16.mxu0 0
      %594 = vmatpush2.bf16.msra.mxu0 0
      %595 = vmatprep.subr.bf16.mxu0 0
      %596 = vmatpush2.bf16.msra.mxu0 0
      %597 = vmatprep.subr.bf16.mxu0 0
      %598 = vmatpush2.bf16.msra.mxu0 0
      %599 = vmatprep.subr.bf16.mxu0 0
      %600 = vmatpush2.bf16.msra.mxu0 0
      %601 = vmatprep.subr.bf16.mxu0 0
      %602 = vmatpush2.bf16.msra.mxu0 0
      %603 = vmatprep.subr.bf16.mxu0 0
      %604 = vmatpush2.bf16.msra.mxu0 0
      %605 = vmatprep.subr.bf16.mxu0 0
      %606 = vmatpush2.bf16.msra.mxu0 0
      %607 = vmatprep.mubr.bf16.mxu0 0
      %608 = vmatmul.mubr.bf16.gmra.mxu0 %v573
      %v609 = vpop.f32.mrf.mxu0
      %v610 = vadd.f32 0.0, %v609
      %v611 = vpop.f32.mrf.mxu0
      %v612 = vpop.f32.mrf.mxu0
      %v613 = vpop.f32.mrf.mxu0
      %614 = vdwg.mxu0
      %v615 = vpack.c.bf16 %v610, %v610
      %v616 = vld [vmem:[%s447] sm:$0xf]
      %v617 = vld [vmem:[%s447 + $0x4] sm:$0xf]
      %v618 = vld [vmem:[%s447 + $0x8] sm:$0xf]
      %v619 = vld [vmem:[%s447 + $0xc] sm:$0xf]
      %v624 = vunpack.c.l.b16 %v616
      %v625 = vunpack.c.l.b16 %v617
      %v626 = vunpack.c.l.b16 %v618
      %v627 = vunpack.c.l.b16 %v619
      %v628 = vpack.c.b16 %v625, %v624
      %v629 = vpack.c.b16 %v627, %v626
      %632 = vmatprep.subr.bf16.mxu0 0
      %633 = vmatpush1.bf16.msra.mxu0 0
      %634 = vmatprep.subr.bf16.mxu0 0
      %635 = vmatpush1.bf16.msra.mxu0 0
      %636 = vmatprep.subr.bf16.mxu0 0
      %637 = vmatpush1.bf16.msra.mxu0 0
      %638 = vmatprep.subr.bf16.mxu0 0
      %639 = vmatpush1.bf16.msra.mxu0 0
      %640 = vmatprep.subr.bf16.mxu0 0
      %641 = vmatpush1.bf16.msra.mxu0 0
      %642 = vmatprep.subr.bf16.mxu0 0
      %643 = vmatpush1.bf16.msra.mxu0 0
      %644 = vmatprep.subr.bf16.mxu0 0
      %645 = vmatpush1.bf16.msra.mxu0 %v629
      %646 = vmatprep.subr.bf16.mxu0 0
      %647 = vmatpush1.bf16.msra.mxu0 %v628
      %648 = vmatprep.subr.bf16.mxu0 0
      %649 = vmatpush2.bf16.msra.mxu0 0
      %650 = vmatprep.subr.bf16.mxu0 0
      %651 = vmatpush2.bf16.msra.mxu0 0
      %652 = vmatprep.subr.bf16.mxu0 0
      %653 = vmatpush2.bf16.msra.mxu0 0
      %654 = vmatprep.subr.bf16.mxu0 0
      %655 = vmatpush2.bf16.msra.mxu0 0
      %656 = vmatprep.subr.bf16.mxu0 0
      %657 = vmatpush2.bf16.msra.mxu0 0
      %658 = vmatprep.subr.bf16.mxu0 0
      %659 = vmatpush2.bf16.msra.mxu0 0
      %660 = vmatprep.subr.bf16.mxu0 0
      %661 = vmatpush2.bf16.msra.mxu0 0
      %662 = vmatprep.subr.bf16.mxu0 0
      %663 = vmatpush2.bf16.msra.mxu0 0
      %664 = vmatprep.mubr.bf16.mxu0 0
      %665 = vmatmul.mubr.bf16.gmra.mxu0 %v573
      %v666 = vpop.f32.mrf.mxu0
      %v667 = vadd.f32 0.0, %v666
      %v668 = vpop.f32.mrf.mxu0
      %v669 = vpop.f32.mrf.mxu0
      %v670 = vpop.f32.mrf.mxu0
      %671 = vdwg.mxu0
      %v672 = vpack.c.bf16 %v667, %v667
      %v673 = vld [vmem:[%s452] sm:$0xf]
      %v674 = vld [vmem:[%s452 + $0x4] sm:$0xf]
      %v675 = vld [vmem:[%s452 + $0x8] sm:$0xf]
      %v676 = vld [vmem:[%s452 + $0xc] sm:$0xf]
      %v681 = vunpack.c.l.b16 %v673
      %v682 = vunpack.c.l.b16 %v674
      %v683 = vunpack.c.l.b16 %v675
      %v684 = vunpack.c.l.b16 %v676
      %v685 = vpack.c.b16 %v682, %v681
      %v686 = vpack.c.b16 %v684, %v683
      %689 = vmatprep.subr.bf16.mxu0 0
      %690 = vmatpush1.bf16.msra.mxu0 0
      %691 = vmatprep.subr.bf16.mxu0 0
      %692 = vmatpush1.bf16.msra.mxu0 0
      %693 = vmatprep.subr.bf16.mxu0 0
      %694 = vmatpush1.bf16.msra.mxu0 0
      %695 = vmatprep.subr.bf16.mxu0 0
      %696 = vmatpush1.bf16.msra.mxu0 0
      %697 = vmatprep.subr.bf16.mxu0 0
      %698 = vmatpush1.bf16.msra.mxu0 0
      %699 = vmatprep.subr.bf16.mxu0 0
      %700 = vmatpush1.bf16.msra.mxu0 0
      %701 = vmatprep.subr.bf16.mxu0 0
      %702 = vmatpush1.bf16.msra.mxu0 %v686
      %703 = vmatprep.subr.bf16.mxu0 0
      %704 = vmatpush1.bf16.msra.mxu0 %v685
      %705 = vmatprep.subr.bf16.mxu0 0
      %706 = vmatpush2.bf16.msra.mxu0 0
      %707 = vmatprep.subr.bf16.mxu0 0
      %708 = vmatpush2.bf16.msra.mxu0 0
      %709 = vmatprep.subr.bf16.mxu0 0
      %710 = vmatpush2.bf16.msra.mxu0 0
      %711 = vmatprep.subr.bf16.mxu0 0
      %712 = vmatpush2.bf16.msra.mxu0 0
      %713 = vmatprep.subr.bf16.mxu0 0
      %714 = vmatpush2.bf16.msra.mxu0 0
      %715 = vmatprep.subr.bf16.mxu0 0
      %716 = vmatpush2.bf16.msra.mxu0 0
      %717 = vmatprep.subr.bf16.mxu0 0
      %718 = vmatpush2.bf16.msra.mxu0 0
      %719 = vmatprep.subr.bf16.mxu0 0
      %720 = vmatpush2.bf16.msra.mxu0 0
      %721 = vmatprep.mubr.bf16.mxu0 0
      %722 = vmatmul.mubr.bf16.gmra.mxu0 %v573
      %v723 = vpop.f32.mrf.mxu0
      %v724 = vadd.f32 0.0, %v723
      %v725 = vpop.f32.mrf.mxu0
      %v726 = vpop.f32.mrf.mxu0
      %v727 = vpop.f32.mrf.mxu0
      %728 = vdwg.mxu0
      %v729 = vpack.c.bf16 %v724, %v724
      %vm730 = vcmask 64512
      %v732 = vsel %vm730, %v615, 0
      %v735 = vsel %vm730, %v672, 0
      %737 = vmatprep.subr.bf16.mxu0 0
      %738 = vmatpush1.bf16.xpose.msra.mxu0 0
      %739 = vmatprep.subr.bf16.mxu0 0
      %740 = vmatpush1.bf16.xpose.msra.mxu0 0
      %741 = vmatprep.subr.bf16.mxu0 0
      %742 = vmatpush1.bf16.xpose.msra.mxu0 0
      %743 = vmatprep.subr.bf16.mxu0 0
      %744 = vmatpush1.bf16.xpose.msra.mxu0 0
      %745 = vmatprep.subr.bf16.mxu0 0
      %746 = vmatpush1.bf16.xpose.msra.mxu0 0
      %747 = vmatprep.subr.bf16.mxu0 0
      %748 = vmatpush1.bf16.xpose.msra.mxu0 0
      %749 = vmatprep.subr.bf16.mxu0 0
      %750 = vmatpush1.bf16.xpose.msra.mxu0 0
      %751 = vmatprep.subr.bf16.mxu0 0
      %752 = vmatpush1.bf16.xpose.msra.mxu0 %v735
      %753 = vmatprep.subr.bf16.mxu0 0
      %754 = vmatpush2.bf16.xpose.msra.mxu0 0
      %755 = vmatprep.subr.bf16.mxu0 0
      %756 = vmatpush2.bf16.xpose.msra.mxu0 0
      %757 = vmatprep.subr.bf16.mxu0 0
      %758 = vmatpush2.bf16.xpose.msra.mxu0 0
      %759 = vmatprep.subr.bf16.mxu0 0
      %760 = vmatpush2.bf16.xpose.msra.mxu0 0
      %761 = vmatprep.subr.bf16.mxu0 0
      %762 = vmatpush2.bf16.xpose.msra.mxu0 0
      %763 = vmatprep.subr.bf16.mxu0 0
      %764 = vmatpush2.bf16.xpose.msra.mxu0 0
      %765 = vmatprep.subr.bf16.mxu0 0
      %766 = vmatpush2.bf16.xpose.msra.mxu0 0
      %767 = vmatprep.subr.bf16.mxu0 0
      %768 = vmatpush2.bf16.xpose.msra.mxu0 0
      %769 = vmatprep.mubr.bf16.mxu0 0
      %770 = vmatmul.mubr.bf16.gmra.mxu0 %v732
      %v771 = vpop.f32.mrf.mxu0
      %v772 = vadd.f32 0.0, %v771
      %v773 = vpop.f32.mrf.mxu0
      %v774 = vpop.f32.mrf.mxu0
      %v775 = vpop.f32.mrf.mxu0
      %776 = vdwg.mxu0
      %v777 = vsel %vm730, %v772, -inf
      %778 = vmax.xlane.f32.xlu0 %v777
      %v779 = vpop.xlane.xlu0 %778
      %v780 = vsub.f32 %v772, %v779
      %v781 = vmul.f32 %v780, 1.442695
      %v782 = vpow.pop %v781
      %v783 = vsel %vm730, %v782, 0.0
      %784 = vadd.xlane.f32.xlu0 %v783
      %v785 = vpop.xlane.xlu0 %784
      %v786 = vrcp.pop %v785
      %v787 = vmul.f32 %v782, %v786
      %v788 = vpack.c.bf16 %v787, %v787
      %v790 = vsel %vm730, %v788, 0
      %vm792 = vcmask 1043456
      %v794 = vsel %vm792, %v729, 0
      %796 = vmatprep.subr.bf16.mxu0 0
      %797 = vmatpush1.bf16.msra.mxu0 0
      %798 = vmatprep.subr.bf16.mxu0 0
      %799 = vmatpush1.bf16.msra.mxu0 0
      %800 = vmatprep.subr.bf16.mxu0 0
      %801 = vmatpush1.bf16.msra.mxu0 0
      %802 = vmatprep.subr.bf16.mxu0 0
      %803 = vmatpush1.bf16.msra.mxu0 0
      %804 = vmatprep.subr.bf16.mxu0 0
      %805 = vmatpush1.bf16.msra.mxu0 0
      %806 = vmatprep.subr.bf16.mxu0 0
      %807 = vmatpush1.bf16.msra.mxu0 0
      %808 = vmatprep.subr.bf16.mxu0 0
      %809 = vmatpush1.bf16.msra.mxu0 0
      %810 = vmatprep.subr.bf16.mxu0 0
      %811 = vmatpush1.bf16.msra.mxu0 %v794
      %812 = vmatprep.subr.bf16.mxu0 0
      %813 = vmatpush2.bf16.msra.mxu0 0
      %814 = vmatprep.subr.bf16.mxu0 0
      %815 = vmatpush2.bf16.msra.mxu0 0
      %816 = vmatprep.subr.bf16.mxu0 0
      %817 = vmatpush2.bf16.msra.mxu0 0
      %818 = vmatprep.subr.bf16.mxu0 0
      %819 = vmatpush2.bf16.msra.mxu0 0
      %820 = vmatprep.subr.bf16.mxu0 0
      %821 = vmatpush2.bf16.msra.mxu0 0
      %822 = vmatprep.subr.bf16.mxu0 0
      %823 = vmatpush2.bf16.msra.mxu0 0
      %824 = vmatprep.subr.bf16.mxu0 0
      %825 = vmatpush2.bf16.msra.mxu0 0
      %826 = vmatprep.subr.bf16.mxu0 0
      %827 = vmatpush2.bf16.msra.mxu0 0
      %828 = vmatprep.mubr.bf16.mxu0 0
      %829 = vmatmul.mubr.bf16.gmra.mxu0 %v790
      %v830 = vpop.f32.mrf.mxu0
      %v831 = vadd.f32 0.0, %v830
      %v832 = vpop.f32.mrf.mxu0
      %v833 = vpop.f32.mrf.mxu0
      %v834 = vpop.f32.mrf.mxu0
      %835 = vdwg.mxu0
      %837 = vrot.lane.b32.xlu0 %v615, 120
      %v838 = vpop.permute.xlu0 %837
      %840 = vrot.lane.b32.xlu0 %v672, 120
      %v841 = vpop.permute.xlu0 %840
      %v843 = vsel %vm730, %v838, 0
      %v846 = vsel %vm730, %v841, 0
      %848 = vmatprep.subr.bf16.mxu0 0
      %849 = vmatpush1.bf16.xpose.msra.mxu0 0
      %850 = vmatprep.subr.bf16.mxu0 0
      %851 = vmatpush1.bf16.xpose.msra.mxu0 0
      %852 = vmatprep.subr.bf16.mxu0 0
      %853 = vmatpush1.bf16.xpose.msra.mxu0 0
      %854 = vmatprep.subr.bf16.mxu0 0
      %855 = vmatpush1.bf16.xpose.msra.mxu0 0
      %856 = vmatprep.subr.bf16.mxu0 0
      %857 = vmatpush1.bf16.xpose.msra.mxu0 0
      %858 = vmatprep.subr.bf16.mxu0 0
      %859 = vmatpush1.bf16.xpose.msra.mxu0 0
      %860 = vmatprep.subr.bf16.mxu0 0
      %861 = vmatpush1.bf16.xpose.msra.mxu0 0
      %862 = vmatprep.subr.bf16.mxu0 0
      %863 = vmatpush1.bf16.xpose.msra.mxu0 %v846
      %864 = vmatprep.subr.bf16.mxu0 0
      %865 = vmatpush2.bf16.xpose.msra.mxu0 0
      %866 = vmatprep.subr.bf16.mxu0 0
      %867 = vmatpush2.bf16.xpose.msra.mxu0 0
      %868 = vmatprep.subr.bf16.mxu0 0
      %869 = vmatpush2.bf16.xpose.msra.mxu0 0
      %870 = vmatprep.subr.bf16.mxu0 0
      %871 = vmatpush2.bf16.xpose.msra.mxu0 0
      %872 = vmatprep.subr.bf16.mxu0 0
      %873 = vmatpush2.bf16.xpose.msra.mxu0 0
      %874 = vmatprep.subr.bf16.mxu0 0
      %875 = vmatpush2.bf16.xpose.msra.mxu0 0
      %876 = vmatprep.subr.bf16.mxu0 0
      %877 = vmatpush2.bf16.xpose.msra.mxu0 0
      %878 = vmatprep.subr.bf16.mxu0 0
      %879 = vmatpush2.bf16.xpose.msra.mxu0 0
      %880 = vmatprep.mubr.bf16.mxu0 0
      %881 = vmatmul.mubr.bf16.gmra.mxu0 %v843
      %v882 = vpop.f32.mrf.mxu0
      %v883 = vadd.f32 0.0, %v882
      %v884 = vpop.f32.mrf.mxu0
      %v885 = vpop.f32.mrf.mxu0
      %v886 = vpop.f32.mrf.mxu0
      %887 = vdwg.mxu0
      %v888 = vsel %vm730, %v883, -inf
      %889 = vmax.xlane.f32.xlu0 %v888
      %v890 = vpop.xlane.xlu0 %889
      %v891 = vsub.f32 %v883, %v890
      %v892 = vmul.f32 %v891, 1.442695
      %v893 = vpow.pop %v892
      %v894 = vsel %vm730, %v893, 0.0
      %895 = vadd.xlane.f32.xlu0 %v894
      %v896 = vpop.xlane.xlu0 %895
      %v897 = vrcp.pop %v896
      %v898 = vmul.f32 %v893, %v897
      %v899 = vpack.c.bf16 %v898, %v898
      %901 = vrot.lane.b32.xlu0 %v729, 120
      %v902 = vpop.permute.xlu0 %901
      %v904 = vsel %vm730, %v899, 0
      %v907 = vsel %vm792, %v902, 0
      %909 = vmatprep.subr.bf16.mxu0 0
      %910 = vmatpush1.bf16.msra.mxu0 0
      %911 = vmatprep.subr.bf16.mxu0 0
      %912 = vmatpush1.bf16.msra.mxu0 0
      %913 = vmatprep.subr.bf16.mxu0 0
      %914 = vmatpush1.bf16.msra.mxu0 0
      %915 = vmatprep.subr.bf16.mxu0 0
      %916 = vmatpush1.bf16.msra.mxu0 0
      %917 = vmatprep.subr.bf16.mxu0 0
      %918 = vmatpush1.bf16.msra.mxu0 0
      %919 = vmatprep.subr.bf16.mxu0 0
      %920 = vmatpush1.bf16.msra.mxu0 0
      %921 = vmatprep.subr.bf16.mxu0 0
      %922 = vmatpush1.bf16.msra.mxu0 0
      %923 = vmatprep.subr.bf16.mxu0 0
      %924 = vmatpush1.bf16.msra.mxu0 %v907
      %925 = vmatprep.subr.bf16.mxu0 0
      %926 = vmatpush2.bf16.msra.mxu0 0
      %927 = vmatprep.subr.bf16.mxu0 0
      %928 = vmatpush2.bf16.msra.mxu0 0
      %929 = vmatprep.subr.bf16.mxu0 0
      %930 = vmatpush2.bf16.msra.mxu0 0
      %931 = vmatprep.subr.bf16.mxu0 0
      %932 = vmatpush2.bf16.msra.mxu0 0
      %933 = vmatprep.subr.bf16.mxu0 0
      %934 = vmatpush2.bf16.msra.mxu0 0
      %935 = vmatprep.subr.bf16.mxu0 0
      %936 = vmatpush2.bf16.msra.mxu0 0
      %937 = vmatprep.subr.bf16.mxu0 0
      %938 = vmatpush2.bf16.msra.mxu0 0
      %939 = vmatprep.subr.bf16.mxu0 0
      %940 = vmatpush2.bf16.msra.mxu0 0
      %941 = vmatprep.mubr.bf16.mxu0 0
      %942 = vmatmul.mubr.bf16.gmra.mxu0 %v904
      %v943 = vpop.f32.mrf.mxu0
      %v944 = vadd.f32 0.0, %v943
      %v945 = vpop.f32.mrf.mxu0
      %v946 = vpop.f32.mrf.mxu0
      %v947 = vpop.f32.mrf.mxu0
      %948 = vdwg.mxu0
      %949 = vrot.lane.b32.xlu0 %v615, 112
      %v950 = vpop.permute.xlu0 %949
      %951 = vrot.lane.b32.xlu0 %v672, 112
      %v952 = vpop.permute.xlu0 %951
      %v954 = vsel %vm730, %v950, 0
      %v957 = vsel %vm730, %v952, 0
      %959 = vmatprep.subr.bf16.mxu0 0
      %960 = vmatpush1.bf16.xpose.msra.mxu0 0
      %961 = vmatprep.subr.bf16.mxu0 0
      %962 = vmatpush1.bf16.xpose.msra.mxu0 0
      %963 = vmatprep.subr.bf16.mxu0 0
      %964 = vmatpush1.bf16.xpose.msra.mxu0 0
      %965 = vmatprep.subr.bf16.mxu0 0
      %966 = vmatpush1.bf16.xpose.msra.mxu0 0
      %967 = vmatprep.subr.bf16.mxu0 0
      %968 = vmatpush1.bf16.xpose.msra.mxu0 0
      %969 = vmatprep.subr.bf16.mxu0 0
      %970 = vmatpush1.bf16.xpose.msra.mxu0 0
      %971 = vmatprep.subr.bf16.mxu0 0
      %972 = vmatpush1.bf16.xpose.msra.mxu0 0
      %973 = vmatprep.subr.bf16.mxu0 0
      %974 = vmatpush1.bf16.xpose.msra.mxu0 %v957
      %975 = vmatprep.subr.bf16.mxu0 0
      %976 = vmatpush2.bf16.xpose.msra.mxu0 0
      %977 = vmatprep.subr.bf16.mxu0 0
      %978 = vmatpush2.bf16.xpose.msra.mxu0 0
      %979 = vmatprep.subr.bf16.mxu0 0
      %980 = vmatpush2.bf16.xpose.msra.mxu0 0
      %981 = vmatprep.subr.bf16.mxu0 0
      %982 = vmatpush2.bf16.xpose.msra.mxu0 0
      %983 = vmatprep.subr.bf16.mxu0 0
      %984 = vmatpush2.bf16.xpose.msra.mxu0 0
      %985 = vmatprep.subr.bf16.mxu0 0
      %986 = vmatpush2.bf16.xpose.msra.mxu0 0
      %987 = vmatprep.subr.bf16.mxu0 0
      %988 = vmatpush2.bf16.xpose.msra.mxu0 0
      %989 = vmatprep.subr.bf16.mxu0 0
      %990 = vmatpush2.bf16.xpose.msra.mxu0 0
      %991 = vmatprep.mubr.bf16.mxu0 0
      %992 = vmatmul.mubr.bf16.gmra.mxu0 %v954
      %v993 = vpop.f32.mrf.mxu0
      %v994 = vadd.f32 0.0, %v993
      %v995 = vpop.f32.mrf.mxu0
      %v996 = vpop.f32.mrf.mxu0
      %v997 = vpop.f32.mrf.mxu0
      %998 = vdwg.mxu0
      %v999 = vsel %vm730, %v994, -inf
      %1000 = vmax.xlane.f32.xlu0 %v999
      %v1001 = vpop.xlane.xlu0 %1000
      %v1002 = vsub.f32 %v994, %v1001
      %v1003 = vmul.f32 %v1002, 1.442695
      %v1004 = vpow.pop %v1003
      %v1005 = vsel %vm730, %v1004, 0.0
      %1006 = vadd.xlane.f32.xlu0 %v1005
      %v1007 = vpop.xlane.xlu0 %1006
      %v1008 = vrcp.pop %v1007
      %v1009 = vmul.f32 %v1004, %v1008
      %v1010 = vpack.c.bf16 %v1009, %v1009
      %1011 = vrot.lane.b32.xlu0 %v729, 112
      %v1012 = vpop.permute.xlu0 %1011
      %v1014 = vsel %vm730, %v1010, 0
      %v1017 = vsel %vm792, %v1012, 0
      %1019 = vmatprep.subr.bf16.mxu0 0
      %1020 = vmatpush1.bf16.msra.mxu0 0
      %1021 = vmatprep.subr.bf16.mxu0 0
      %1022 = vmatpush1.bf16.msra.mxu0 0
      %1023 = vmatprep.subr.bf16.mxu0 0
      %1024 = vmatpush1.bf16.msra.mxu0 0
      %1025 = vmatprep.subr.bf16.mxu0 0
      %1026 = vmatpush1.bf16.msra.mxu0 0
      %1027 = vmatprep.subr.bf16.mxu0 0
      %1028 = vmatpush1.bf16.msra.mxu0 0
      %1029 = vmatprep.subr.bf16.mxu0 0
      %1030 = vmatpush1.bf16.msra.mxu0 0
      %1031 = vmatprep.subr.bf16.mxu0 0
      %1032 = vmatpush1.bf16.msra.mxu0 0
      %1033 = vmatprep.subr.bf16.mxu0 0
      %1034 = vmatpush1.bf16.msra.mxu0 %v1017
      %1035 = vmatprep.subr.bf16.mxu0 0
      %1036 = vmatpush2.bf16.msra.mxu0 0
      %1037 = vmatprep.subr.bf16.mxu0 0
      %1038 = vmatpush2.bf16.msra.mxu0 0
      %1039 = vmatprep.subr.bf16.mxu0 0
      %1040 = vmatpush2.bf16.msra.mxu0 0
      %1041 = vmatprep.subr.bf16.mxu0 0
      %1042 = vmatpush2.bf16.msra.mxu0 0
      %1043 = vmatprep.subr.bf16.mxu0 0
      %1044 = vmatpush2.bf16.msra.mxu0 0
      %1045 = vmatprep.subr.bf16.mxu0 0
      %1046 = vmatpush2.bf16.msra.mxu0 0
      %1047 = vmatprep.subr.bf16.mxu0 0
      %1048 = vmatpush2.bf16.msra.mxu0 0
      %1049 = vmatprep.subr.bf16.mxu0 0
      %1050 = vmatpush2.bf16.msra.mxu0 0
      %1051 = vmatprep.mubr.bf16.mxu0 0
      %1052 = vmatmul.mubr.bf16.gmra.mxu0 %v1014
      %v1053 = vpop.f32.mrf.mxu0
      %v1054 = vadd.f32 0.0, %v1053
      %v1055 = vpop.f32.mrf.mxu0
      %v1056 = vpop.f32.mrf.mxu0
      %v1057 = vpop.f32.mrf.mxu0
      %1058 = vdwg.mxu0
      %1059 = vrot.lane.b32.xlu0 %v615, 104
      %v1060 = vpop.permute.xlu0 %1059
      %1061 = vrot.lane.b32.xlu0 %v672, 104
      %v1062 = vpop.permute.xlu0 %1061
      %v1064 = vsel %vm730, %v1060, 0
      %v1067 = vsel %vm730, %v1062, 0
      %1069 = vmatprep.subr.bf16.mxu0 0
      %1070 = vmatpush1.bf16.xpose.msra.mxu0 0
      %1071 = vmatprep.subr.bf16.mxu0 0
      %1072 = vmatpush1.bf16.xpose.msra.mxu0 0
      %1073 = vmatprep.subr.bf16.mxu0 0
      %1074 = vmatpush1.bf16.xpose.msra.mxu0 0
      %1075 = vmatprep.subr.bf16.mxu0 0
      %1076 = vmatpush1.bf16.xpose.msra.mxu0 0
      %1077 = vmatprep.subr.bf16.mxu0 0
      %1078 = vmatpush1.bf16.xpose.msra.mxu0 0
      %1079 = vmatprep.subr.bf16.mxu0 0
      %1080 = vmatpush1.bf16.xpose.msra.mxu0 0
      %1081 = vmatprep.subr.bf16.mxu0 0
      %1082 = vmatpush1.bf16.xpose.msra.mxu0 0
      %1083 = vmatprep.subr.bf16.mxu0 0
      %1084 = vmatpush1.bf16.xpose.msra.mxu0 %v1067
      %1085 = vmatprep.subr.bf16.mxu0 0
      %1086 = vmatpush2.bf16.xpose.msra.mxu0 0
      %1087 = vmatprep.subr.bf16.mxu0 0
      %1088 = vmatpush2.bf16.xpose.msra.mxu0 0
      %1089 = vmatprep.subr.bf16.mxu0 0
      %1090 = vmatpush2.bf16.xpose.msra.mxu0 0
      %1091 = vmatprep.subr.bf16.mxu0 0
      %1092 = vmatpush2.bf16.xpose.msra.mxu0 0
      %1093 = vmatprep.subr.bf16.mxu0 0
      %1094 = vmatpush2.bf16.xpose.msra.mxu0 0
      %1095 = vmatprep.subr.bf16.mxu0 0
      %1096 = vmatpush2.bf16.xpose.msra.mxu0 0
      %1097 = vmatprep.subr.bf16.mxu0 0
      %1098 = vmatpush2.bf16.xpose.msra.mxu0 0
      %1099 = vmatprep.subr.bf16.mxu0 0
      %1100 = vmatpush2.bf16.xpose.msra.mxu0 0
      %1101 = vmatprep.mubr.bf16.mxu0 0
      %1102 = vmatmul.mubr.bf16.gmra.mxu0 %v1064
      %v1103 = vpop.f32.mrf.mxu0
      %v1104 = vadd.f32 0.0, %v1103
      %v1105 = vpop.f32.mrf.mxu0
      %v1106 = vpop.f32.mrf.mxu0
      %v1107 = vpop.f32.mrf.mxu0
      %1108 = vdwg.mxu0
      %v1109 = vsel %vm730, %v1104, -inf
      %1110 = vmax.xlane.f32.xlu0 %v1109
      %v1111 = vpop.xlane.xlu0 %1110
      %v1112 = vsub.f32 %v1104, %v1111
      %v1113 = vmul.f32 %v1112, 1.442695
      %v1114 = vpow.pop %v1113
      %v1115 = vsel %vm730, %v1114, 0.0
      %1116 = vadd.xlane.f32.xlu0 %v1115
      %v1117 = vpop.xlane.xlu0 %1116
      %v1118 = vrcp.pop %v1117
      %v1119 = vmul.f32 %v1114, %v1118
      %v1120 = vpack.c.bf16 %v1119, %v1119
      %1121 = vrot.lane.b32.xlu0 %v729, 104
      %v1122 = vpop.permute.xlu0 %1121
      %v1124 = vsel %vm730, %v1120, 0
      %v1127 = vsel %vm792, %v1122, 0
      %1129 = vmatprep.subr.bf16.mxu0 0
      %1130 = vmatpush1.bf16.msra.mxu0 0
      %1131 = vmatprep.subr.bf16.mxu0 0
      %1132 = vmatpush1.bf16.msra.mxu0 0
      %1133 = vmatprep.subr.bf16.mxu0 0
      %1134 = vmatpush1.bf16.msra.mxu0 0
      %1135 = vmatprep.subr.bf16.mxu0 0
      %1136 = vmatpush1.bf16.msra.mxu0 0
      %1137 = vmatprep.subr.bf16.mxu0 0
      %1138 = vmatpush1.bf16.msra.mxu0 0
      %1139 = vmatprep.subr.bf16.mxu0 0
      %1140 = vmatpush1.bf16.msra.mxu0 0
      %1141 = vmatprep.subr.bf16.mxu0 0
      %1142 = vmatpush1.bf16.msra.mxu0 0
      %1143 = vmatprep.subr.bf16.mxu0 0
      %1144 = vmatpush1.bf16.msra.mxu0 %v1127
      %1145 = vmatprep.subr.bf16.mxu0 0
      %1146 = vmatpush2.bf16.msra.mxu0 0
      %1147 = vmatprep.subr.bf16.mxu0 0
      %1148 = vmatpush2.bf16.msra.mxu0 0
      %1149 = vmatprep.subr.bf16.mxu0 0
      %1150 = vmatpush2.bf16.msra.mxu0 0
      %1151 = vmatprep.subr.bf16.mxu0 0
      %1152 = vmatpush2.bf16.msra.mxu0 0
      %1153 = vmatprep.subr.bf16.mxu0 0
      %1154 = vmatpush2.bf16.msra.mxu0 0
      %1155 = vmatprep.subr.bf16.mxu0 0
      %1156 = vmatpush2.bf16.msra.mxu0 0
      %1157 = vmatprep.subr.bf16.mxu0 0
      %1158 = vmatpush2.bf16.msra.mxu0 0
      %1159 = vmatprep.subr.bf16.mxu0 0
      %1160 = vmatpush2.bf16.msra.mxu0 0
      %1161 = vmatprep.mubr.bf16.mxu0 0
      %1162 = vmatmul.mubr.bf16.gmra.mxu0 %v1124
      %v1163 = vpop.f32.mrf.mxu0
      %v1164 = vadd.f32 0.0, %v1163
      %v1165 = vpop.f32.mrf.mxu0
      %v1166 = vpop.f32.mrf.mxu0
      %v1167 = vpop.f32.mrf.mxu0
      %1168 = vdwg.mxu0
      %1170 = vrot.lane.b32.xlu0 %v944, 8
      %v1171 = vpop.permute.xlu0 %1170
      %1174 = vrot.lane.b32.xlu0 %v1054, 16
      %v1175 = vpop.permute.xlu0 %1174
      %1178 = vrot.lane.b32.xlu0 %v1164, 24
      %v1179 = vpop.permute.xlu0 %1178
      %v1181 = vsel %vm730, %v831, %v1171
      %vm1182 = vcmask 130048
      %v1183 = vsel %vm1182, %v1181, %v1175
      %vm1184 = vcmask 195584
      %v1185 = vsel %vm1184, %v1183, %v1179
      %v1186 = vpack.c.bf16 %v1185, %v1185
      %v1187 = vld [vmem:[%s457] sm:$0xf]
      %v1188 = vld [vmem:[%s457 + $0x4] sm:$0xf]
      %v1189 = vld [vmem:[%s457 + $0x8] sm:$0xf]
      %v1190 = vld [vmem:[%s457 + $0xc] sm:$0xf]
      %v1191 = vlaneseq
      %v1192 = vshrl.u32 %v1191, 7
      %v1193 = vsub.s32 2, %v1192
      %v1194 = vrot.slane %v529, %v1193
      %v1199 = vunpack.c.l.b16 %v1187
      %v1200 = vunpack.c.l.b16 %v1188
      %v1201 = vunpack.c.l.b16 %v1189
      %v1202 = vunpack.c.l.b16 %v1190
      %v1203 = vpack.c.b16 %v1200, %v1199
      %v1204 = vpack.c.b16 %v1202, %v1201
      %v1208 = vsel %vm530, %v1186, 0
      %1210 = vmatprep.subr.bf16.mxu0 0
      %1211 = vmatpush1.bf16.msra.mxu0 0
      %1212 = vmatprep.subr.bf16.mxu0 0
      %1213 = vmatpush1.bf16.msra.mxu0 0
      %1214 = vmatprep.subr.bf16.mxu0 0
      %1215 = vmatpush1.bf16.msra.mxu0 0
      %1216 = vmatprep.subr.bf16.mxu0 0
      %1217 = vmatpush1.bf16.msra.mxu0 0
      %1218 = vmatprep.subr.bf16.mxu0 0
      %1219 = vmatpush1.bf16.msra.mxu0 0
      %1220 = vmatprep.subr.bf16.mxu0 0
      %1221 = vmatpush1.bf16.msra.mxu0 0
      %1222 = vmatprep.subr.bf16.mxu0 0
      %1223 = vmatpush1.bf16.msra.mxu0 %v1204
      %1224 = vmatprep.subr.bf16.mxu0 0
      %1225 = vmatpush1.bf16.msra.mxu0 %v1203
      %1226 = vmatprep.subr.bf16.mxu0 0
      %1227 = vmatpush2.bf16.msra.mxu0 0
      %1228 = vmatprep.subr.bf16.mxu0 0
      %1229 = vmatpush2.bf16.msra.mxu0 0
      %1230 = vmatprep.subr.bf16.mxu0 0
      %1231 = vmatpush2.bf16.msra.mxu0 0
      %1232 = vmatprep.subr.bf16.mxu0 0
      %1233 = vmatpush2.bf16.msra.mxu0 0
      %1234 = vmatprep.subr.bf16.mxu0 0
      %1235 = vmatpush2.bf16.msra.mxu0 0
      %1236 = vmatprep.subr.bf16.mxu0 0
      %1237 = vmatpush2.bf16.msra.mxu0 0
      %1238 = vmatprep.subr.bf16.mxu0 0
      %1239 = vmatpush2.bf16.msra.mxu0 0
      %1240 = vmatprep.subr.bf16.mxu0 0
      %1241 = vmatpush2.bf16.msra.mxu0 0
      %1242 = vmatprep.mubr.bf16.mxu0 0
      %1243 = vmatmul.mubr.bf16.gmra.mxu0 %v1208
      %v1244 = vpop.f32.mrf.mxu0
      %v1245 = vadd.f32 %v1194, %v1244
      %v1246 = vpop.f32.mrf.mxu0
      %v1247 = vpop.f32.mrf.mxu0
      %v1248 = vpop.f32.mrf.mxu0
      %1249 = vdwg.mxu0
      %v1250 = vadd.f32 %v528, %v1245
      %v1251 = vsel %vm530, %v1250, 0.0
      %1252 = vadd.xlane.f32.xlu0 %v1251
      %v1253 = vpop.xlane.xlu0 %1252
      %v1254 = vmul.f32 %v1253, %v534
      %v1255 = vsub.f32 %v1250, %v1254
      %v1256 = vmul.f32 %v1255, %v1255
      %v1257 = vsel %vm530, %v1256, 0.0
      %1258 = vadd.xlane.f32.xlu0 %v1257
      %v1259 = vpop.xlane.xlu0 %1258
      %v1260 = vmul.f32 %v1259, %v534
      %v1261 = vadd.f32 %v1260, 1e-05
      %v1262 = vrsqrt.pop %v1261
      %v1263 = vmul.f32 %v1255, %v1262
      %v1264 = vlaneseq
      %v1265 = vshrl.u32 %v1264, 7
      %v1266 = vsub.s32 3, %v1265
      %v1267 = vrot.slane %v529, %v1266
      %v1268 = vmul.f32 %v1263, %v1267
      %v1269 = vlaneseq
      %v1270 = vshrl.u32 %v1269, 7
      %v1271 = vsub.s32 4, %v1270
      %v1272 = vrot.slane %v529, %v1271
      %v1273 = vadd.f32 %v1268, %v1272
      %v1274 = vpack.c.bf16 %v1273, %v1273
      %v1275 = vld [vmem:[%s462] sm:$0xf]
      %v1276 = vld [vmem:[%s462 + $0x4] sm:$0xf]
      %v1277 = vld [vmem:[%s462 + $0x8] sm:$0xf]
      %v1278 = vld [vmem:[%s462 + $0xc] sm:$0xf]
      %v1279 = vld [vmem:[%s465] sm:$0x1]
      %v1281 = vlaneseq
      %v1282 = vshrl.u32 %v1281, 7
      %v1283 = vsub.s32 0, %v1282
      %v1284 = vrot.slane %v1279, %v1283
      %v1290 = vunpack.c.l.b16 %v1275
      %v1291 = vunpack.c.l.b16 %v1276
      %v1292 = vunpack.c.l.b16 %v1277
      %v1293 = vunpack.c.l.b16 %v1278
      %v1294 = vpack.c.b16 %v1291, %v1290
      %v1295 = vpack.c.b16 %v1293, %v1292
      %v1299 = vsel %vm530, %v1274, 0
      %1301 = vmatprep.subr.bf16.mxu0 0
      %1302 = vmatpush1.bf16.msra.mxu0 0
      %1303 = vmatprep.subr.bf16.mxu0 0
      %1304 = vmatpush1.bf16.msra.mxu0 0
      %1305 = vmatprep.subr.bf16.mxu0 0
      %1306 = vmatpush1.bf16.msra.mxu0 0
      %1307 = vmatprep.subr.bf16.mxu0 0
      %1308 = vmatpush1.bf16.msra.mxu0 0
      %1309 = vmatprep.subr.bf16.mxu0 0
      %1310 = vmatpush1.bf16.msra.mxu0 0
      %1311 = vmatprep.subr.bf16.mxu0 0
      %1312 = vmatpush1.bf16.msra.mxu0 0
      %1313 = vmatprep.subr.bf16.mxu0 0
      %1314 = vmatpush1.bf16.msra.mxu0 %v1295
      %1315 = vmatprep.subr.bf16.mxu0 0
      %1316 = vmatpush1.bf16.msra.mxu0 %v1294
      %1317 = vmatprep.subr.bf16.mxu0 0
      %1318 = vmatpush2.bf16.msra.mxu0 0
      %1319 = vmatprep.subr.bf16.mxu0 0
      %1320 = vmatpush2.bf16.msra.mxu0 0
      %1321 = vmatprep.subr.bf16.mxu0 0
      %1322 = vmatpush2.bf16.msra.mxu0 0
      %1323 = vmatprep.subr.bf16.mxu0 0
      %1324 = vmatpush2.bf16.msra.mxu0 0
      %1325 = vmatprep.subr.bf16.mxu0 0
      %1326 = vmatpush2.bf16.msra.mxu0 0
      %1327 = vmatprep.subr.bf16.mxu0 0
      %1328 = vmatpush2.bf16.msra.mxu0 0
      %1329 = vmatprep.subr.bf16.mxu0 0
      %1330 = vmatpush2.bf16.msra.mxu0 0
      %1331 = vmatprep.subr.bf16.mxu0 0
      %1332 = vmatpush2.bf16.msra.mxu0 0
      %1333 = vmatprep.mubr.bf16.mxu0 0
      %1334 = vmatmul.mubr.bf16.gmra.mxu0 %v1299
      %v1335 = vpop.f32.mrf.mxu0
      %v1336 = vadd.f32 %v1284, %v1335
      %v1337 = vpop.f32.mrf.mxu0
      %v1338 = vpop.f32.mrf.mxu0
      %v1339 = vpop.f32.mrf.mxu0
      %1340 = vdwg.mxu0
      %v1341 = vmul.f32 %v1336, 0.5
      %v1342 = vmul.f32 %v1336, 0.70710677
      %v1343 = verf.f32.pop %v1342
      %v1344 = vadd.f32 %v1343, 1.0
      %v1345 = vmul.f32 %v1341, %v1344
      %v1346 = vpack.c.bf16 %v1345, %v1345
      %v1347 = vld [vmem:[%s470] sm:$0xf]
      %v1348 = vld [vmem:[%s470 + $0x4] sm:$0xf]
      %v1349 = vld [vmem:[%s470 + $0x8] sm:$0xf]
      %v1350 = vld [vmem:[%s470 + $0xc] sm:$0xf]
      %v1351 = vld [vmem:[%s470 + $0x10] sm:$0xf]
      %v1352 = vld [vmem:[%s470 + $0x14] sm:$0xf]
      %v1353 = vld [vmem:[%s470 + $0x18] sm:$0xf]
      %v1354 = vld [vmem:[%s470 + $0x1c] sm:$0xf]
      %v1355 = vld [vmem:[%s470 + $0x20] sm:$0xf]
      %v1356 = vld [vmem:[%s470 + $0x24] sm:$0xf]
      %v1357 = vld [vmem:[%s470 + $0x28] sm:$0xf]
      %v1358 = vld [vmem:[%s470 + $0x2c] sm:$0xf]
      %v1359 = vld [vmem:[%s470 + $0x30] sm:$0xf]
      %v1360 = vld [vmem:[%s470 + $0x34] sm:$0xf]
      %v1361 = vld [vmem:[%s470 + $0x38] sm:$0xf]
      %v1362 = vld [vmem:[%s470 + $0x3c] sm:$0xf]
      %v1363 = vlaneseq
      %v1364 = vshrl.u32 %v1363, 7
      %v1365 = vsub.s32 5, %v1364
      %v1366 = vrot.slane %v529, %v1365
      %v1383 = vunpack.c.l.b16 %v1347
      %v1384 = vunpack.c.l.b16 %v1348
      %v1385 = vunpack.c.l.b16 %v1349
      %v1386 = vunpack.c.l.b16 %v1350
      %v1387 = vunpack.c.l.b16 %v1351
      %v1388 = vunpack.c.l.b16 %v1352
      %v1389 = vunpack.c.l.b16 %v1353
      %v1390 = vunpack.c.l.b16 %v1354
      %v1391 = vunpack.c.l.b16 %v1355
      %v1392 = vunpack.c.l.b16 %v1356
      %v1393 = vunpack.c.l.b16 %v1357
      %v1394 = vunpack.c.l.b16 %v1358
      %v1395 = vunpack.c.l.b16 %v1359
      %v1396 = vunpack.c.l.b16 %v1360
      %v1397 = vunpack.c.l.b16 %v1361
      %v1398 = vunpack.c.l.b16 %v1362
      %v1399 = vpack.c.b16 %v1384, %v1383
      %v1400 = vpack.c.b16 %v1386, %v1385
      %v1401 = vpack.c.b16 %v1388, %v1387
      %v1402 = vpack.c.b16 %v1390, %v1389
      %v1403 = vpack.c.b16 %v1392, %v1391
      %v1404 = vpack.c.b16 %v1394, %v1393
      %v1405 = vpack.c.b16 %v1396, %v1395
      %v1406 = vpack.c.b16 %v1398, %v1397
      %1415 = vmatprep.subr.bf16.mxu0 0
      %1416 = vmatpush1.bf16.msra.mxu0 %v1406
      %1417 = vmatprep.subr.bf16.mxu0 0
      %1418 = vmatpush1.bf16.msra.mxu0 %v1405
      %1419 = vmatprep.subr.bf16.mxu0 0
      %1420 = vmatpush1.bf16.msra.mxu0 %v1404
      %1421 = vmatprep.subr.bf16.mxu0 0
      %1422 = vmatpush1.bf16.msra.mxu0 %v1403
      %1423 = vmatprep.subr.bf16.mxu0 0
      %1424 = vmatpush1.bf16.msra.mxu0 %v1402
      %1425 = vmatprep.subr.bf16.mxu0 0
      %1426 = vmatpush1.bf16.msra.mxu0 %v1401
      %1427 = vmatprep.subr.bf16.mxu0 0
      %1428 = vmatpush1.bf16.msra.mxu0 %v1400
      %1429 = vmatprep.subr.bf16.mxu0 0
      %1430 = vmatpush1.bf16.msra.mxu0 %v1399
      %1431 = vmatprep.subr.bf16.mxu0 0
      %1432 = vmatpush2.bf16.msra.mxu0 0
      %1433 = vmatprep.subr.bf16.mxu0 0
      %1434 = vmatpush2.bf16.msra.mxu0 0
      %1435 = vmatprep.subr.bf16.mxu0 0
      %1436 = vmatpush2.bf16.msra.mxu0 0
      %1437 = vmatprep.subr.bf16.mxu0 0
      %1438 = vmatpush2.bf16.msra.mxu0 0
      %1439 = vmatprep.subr.bf16.mxu0 0
      %1440 = vmatpush2.bf16.msra.mxu0 0
      %1441 = vmatprep.subr.bf16.mxu0 0
      %1442 = vmatpush2.bf16.msra.mxu0 0
      %1443 = vmatprep.subr.bf16.mxu0 0
      %1444 = vmatpush2.bf16.msra.mxu0 0
      %1445 = vmatprep.subr.bf16.mxu0 0
      %1446 = vmatpush2.bf16.msra.mxu0 0
      %1447 = vmatprep.mubr.bf16.mxu0 0
      %1448 = vmatmul.mubr.bf16.gmra.mxu0 %v1346
      %v1449 = vpop.f32.mrf.mxu0
      %v1450 = vadd.f32 %v1366, %v1449
      %v1451 = vpop.f32.mrf.mxu0
      %v1452 = vpop.f32.mrf.mxu0
      %v1453 = vpop.f32.mrf.mxu0
      %1454 = vdwg.mxu0
      %v1455 = vadd.f32 %v1250, %v1450
      %p1456 = scmp.ne.s32.totalorder %s26, 1
      // Predicated region
      $region96: #{bert_embedder_forward.1} parent=55 // pred_check
        %p1457 = pneg %p1456
      $region97: #{bert_embedder_forward.1} parent=55 // pred_check_branch
        %1459 = sbr.rel (%p1457) target = $region99
      $region98: #{bert_embedder_forward.1} parent=55 // pred_region
        %1460 = vst.msk [vmem:[%s474] sm:$0xff] %vm530, %v1455
      $region99: #{bert_embedder_forward.1} parent=55 // pred_fallthru
        _
      %p1461 = scmp.eq.s32.totalorder %s26, 1
      // Predicated region
      $region100: #{bert_embedder_forward.1} parent=55 // pred_check
        %p1462 = pneg %p1461
      $region101: #{bert_embedder_forward.1} parent=55 // pred_check_branch
        %1464 = sbr.rel (%p1462) target = $region103
      $region102: #{bert_embedder_forward.1} parent=55 // pred_region
        %v1465 = vld [vmem:[%s9] sm:$0x3]
        %v1466 = vsel %vm530, %v1455, 0.0
        %1467 = vadd.xlane.f32.xlu0 %v1466
        %v1468 = vpop.xlane.xlu0 %1467
        %v1469 = vmul.f32 %v1468, %v534
        %v1470 = vsub.f32 %v1455, %v1469
        %v1471 = vmul.f32 %v1470, %v1470
        %v1472 = vsel %vm530, %v1471, 0.0
        %1473 = vadd.xlane.f32.xlu0 %v1472
        %v1474 = vpop.xlane.xlu0 %1473
        %v1475 = vmul.f32 %v1474, %v534
        %v1476 = vadd.f32 %v1475, 1e-05
        %v1477 = vrsqrt.pop %v1476
        %v1478 = vmul.f32 %v1470, %v1477
        %v1479 = vlaneseq
        %v1480 = vshrl.u32 %v1479, 7
        %v1481 = vsub.s32 0, %v1480
        %v1482 = vrot.slane %v1465, %v1481
        %v1483 = vmul.f32 %v1478, %v1482
        %v1484 = vlaneseq
        %v1485 = vshrl.u32 %v1484, 7
        %v1486 = vsub.s32 1, %v1485
        %v1487 = vrot.slane %v1465, %v1486
        %v1488 = vadd.f32 %v1483, %v1487
        %1489 = vst.msk [vmem:[%s474] sm:$0xff] %vm530, %v1488
      $region103: #{bert_embedder_forward.1} parent=55 // pred_fallthru
        _
      %p1490 = scmp.lt.s32.totalorder %s25, 1
      %s1491 = scalar_select %p1490, %s25, 1
      %s1492 = smul.addr %s1491, 8
      %s1493 = scalar_lea.vmem %s10, %s1492
      // Predicated region
      $region104: #{bert_embedder_forward.1} parent=55 // pred_check
        %p1494 = pneg %p280
      $region105: #{bert_embedder_forward.1} parent=55 // pred_check_branch
        %1496 = sbr.rel (%p1494) target = $region107
      $region106: #{bert_embedder_forward.1} parent=55 // pred_region
        _
      $region107: #{bert_embedder_forward.1} parent=55 // pred_fallthru
        _
    $region56: #{bert_embedder_forward.1} parent=5 // pred_fallthru
      _
    %p1497 = scmp.le.s32.totalorder 2, %s16
    // Predicated region
    $region108: #{bert_embedder_forward.1} parent=5 // pred_check
      %p1498 = pneg %p1497
    $region109: #{bert_embedder_forward.1} parent=5 // pred_check_branch
      %1500 = sbr.rel (%p1498) target = $region111
    $region110: #{bert_embedder_forward.1} parent=5 // pred_region
      %s1501 = ssub.s32 %s16, 2
      // Predicated region
      $region112: #{bert_embedder_forward.1} parent=110 // pred_check
        %p1502 = pneg %p286
      $region113: #{bert_embedder_forward.1} parent=110 // pred_check_branch
        %1504 = sbr.rel (%p1502) target = $region115
      $region114: #{bert_embedder_forward.1} parent=110 // pred_region
        %p1505 = scmp.lt.s32.totalorder %s27, 1
        %s1506 = scalar_select %p1505, %s27, 1
        %s1507 = smul.addr %s1506, 8
        %s1508 = scalar_lea.vmem %s10, %s1507
      $region115: #{bert_embedder_forward.1} parent=110 // pred_fallthru
        _
    $region111: #{bert_embedder_forward.1} parent=5 // pred_fallthru
      _
  $region6: #{bert_embedder_forward.1} parent=0 // loop_footer
    %s20 = sadd.s32 1, %s16
  $region7: #{bert_embedder_forward.1} parent=0 // loop_footer_branch
    %15 = sbr.rel target = $region3
  $region8: #{bert_embedder_forward.1} parent=0 // loop_exit
    _

</llo_original>
